<compile_context>
chip_gen: v7x
topology: tpu7x:2x2x1
jax: 0.10.0
libtpu: 0.0.40
codegen_flags: <defaults>
</compile_context>

<pallas_src>
import jax
import jax.numpy as jnp
from jax.experimental import pallas as pl
from jax.experimental.pallas import tpu as pltpu

_IN = 512
_HID = 512
_OUT = 10
_OUT_PAD = 128  # lane-dense padded width for the final logits


def _round_up(x, m):
    return (x + m - 1) // m * m


def _mlp_kernel(h_ref, w1_ref, b1_ref, w2_ref, b2_ref, w3_ref, b3_ref, o_ref):
    # Fused Linear->ReLU->Linear->ReLU->Linear on one batch tile.
    # bf16 MXU inputs, f32 accumulation (preferred_element_type), f32 epilogue.
    x = h_ref[...]
    if x.dtype != jnp.bfloat16:         # only taken if the caller supplies f32 h
        x = x.astype(jnp.bfloat16)

    z1 = jnp.dot(x, w1_ref[...], preferred_element_type=jnp.float32) + b1_ref[...]
    a1 = jnp.maximum(z1, 0.0).astype(jnp.bfloat16)

    z2 = jnp.dot(a1, w2_ref[...], preferred_element_type=jnp.float32) + b2_ref[...]
    a2 = jnp.maximum(z2, 0.0).astype(jnp.bfloat16)

    z3 = jnp.dot(a2, w3_ref[...], preferred_element_type=jnp.float32) + b3_ref[...]
    o_ref[...] = z3.astype(o_ref.dtype)


def prepare_params(w1, b1, w2, b2, w3, b3):
    """One-time parameter preprocessing (call at load time, NOT per inference).

    Accepts PyTorch nn.Linear layout: weights (out, in), biases (out,).
    Returns pre-transposed (in, out) bf16 weights (final layer zero-padded to a
    lane-dense 128-wide output) and f32 (1, out) biases.
    """
    w1t = jnp.asarray(w1, jnp.float32).T.astype(jnp.bfloat16)              # (512, 512)
    w2t = jnp.asarray(w2, jnp.float32).T.astype(jnp.bfloat16)              # (512, 512)
    w3t = jnp.zeros((_HID, _OUT_PAD), jnp.bfloat16).at[:, :_OUT].set(
        jnp.asarray(w3, jnp.float32).T.astype(jnp.bfloat16))               # (512, 128)
    b1r = jnp.asarray(b1, jnp.float32).reshape(1, _HID)
    b2r = jnp.asarray(b2, jnp.float32).reshape(1, _HID)
    b3r = jnp.zeros((1, _OUT_PAD), jnp.float32).at[:, :_OUT].set(
        jnp.asarray(b3, jnp.float32).reshape(1, _OUT))
    return (w1t, b1r, w2t, b2r, w3t, b3r)


def _choose_tm(batch, tm):
    b_aligned = _round_up(batch, 8)
    if tm is None:
        # Big tiles amortize the ~0.35us per-step overhead (63% -> ~85% of HBM
        # roofline going 256 -> 512/1024 on v6e/v7x).
        tm = 1024 if batch >= 2048 else 512
    tm = max(8, (tm // 8) * 8)        # (8,128) rule: sublane block dim must be 8-aligned
    tm = min(tm, b_aligned)
    # v7x has 2 TensorCores: keep >= 2 parallel grid steps whenever possible.
    if b_aligned >= 16 and pl.cdiv(batch, tm) < 2:
        tm = _round_up(pl.cdiv(b_aligned, 2), 8)
    return tm


def label_predictor(h, params, *, tm=None, out_dtype=jnp.float32):
    """h: (B, 512), bf16 preferred (or f32) -> logits (B, 10) in out_dtype.

    `params` must come from prepare_params() (hoisted one-time preprocessing).
    Produce h in bf16 upstream when possible: with the weights VMEM-resident, the
    h tile is the dominant per-step HBM read on v6e/v7x and bf16 halves it.
    On v6e, out_dtype=jnp.bfloat16 additionally halves logits writeback.
    """
    w1, b1, w2, b2, w3, b3 = params
    B, D = h.shape
    assert D == _IN

    tm = _choose_tm(B, tm)
    grid = (pl.cdiv(B, tm),)          # ragged last tile handled by Pallas (masked) -- no jnp.pad copy
    const = lambda i: (0, 0)          # weights/biases resident across all batch tiles

    grid_spec = pltpu.PrefetchScalarGridSpec(
        num_scalar_prefetch=0,
        grid=grid,
        in_specs=[
            pl.BlockSpec((tm, _IN), lambda i: (i, 0)),      # streamed activation tile
            pl.BlockSpec((_IN, _HID), const),               # w1 (bf16, resident)
            pl.BlockSpec((1, _HID), const),                 # b1
            pl.BlockSpec((_HID, _HID), const),              # w2
            pl.BlockSpec((1, _HID), const),                 # b2
            pl.BlockSpec((_HID, _OUT_PAD), const),          # w3 (padded to 128 lanes)
            pl.BlockSpec((1, _OUT_PAD), const),             # b3 (padded)
        ],
        out_specs=pl.BlockSpec((tm, _OUT_PAD), lambda i: (i, 0)),
    )
    # NOTE(v7x): the six constant-index weight/bias specs could take
    # pipeline_mode=pl.Buffered(1) to drop their second VMEM buffer (~1.2 MB);
    # left at the pipeline default here for maximal portability -- VMEM is
    # nowhere near the limit even at tm=1024.

    flops = 2 * B * (_IN * _HID + _HID * _HID + _HID * _OUT_PAD)
    bytes_accessed = (
        h.size * h.dtype.itemsize                              # activations in
        + (w1.size + w2.size + w3.size) * 2                    # bf16 weights (read once)
        + (b1.size + b2.size + b3.size) * 4                    # f32 biases
        + B * _OUT_PAD * jnp.dtype(out_dtype).itemsize         # padded logits out
    )

    out = pl.pallas_call(
        _mlp_kernel,
        out_shape=jax.ShapeDtypeStruct((B, _OUT_PAD), out_dtype),
        grid_spec=grid_spec,
        compiler_params=pltpu.CompilerParams(
            dimension_semantics=("parallel",),   # batch tiles shard across v7x's 2 TCs
            vmem_limit_bytes=32 * 1024 * 1024,
        ),
        cost_estimate=pl.CostEstimate(
            flops=flops, transcendentals=0, bytes_accessed=bytes_accessed
        ),
    )(h, w1, b1, w2, b2, w3, b3)

    return out[:, :_OUT]


if __name__ == "__main__":
    key = jax.random.PRNGKey(0)
    k_h, k1, k2, k3 = jax.random.split(key, 4)

    B = 24  # small batch; feature dims fixed at 512 -> 512 -> 512 -> 10 by the module
    # Producer emits bf16 activations directly (per review: don't wrapper-cast per call).
    h = jax.random.normal(k_h, (B, _IN), jnp.float32).astype(jnp.bfloat16)

    def init_linear(k, fan_in, fan_out):
        # Deterministic init mimicking torch.nn.Linear defaults:
        # weight (out, in), bias (out,), both U(-1/sqrt(fan_in), 1/sqrt(fan_in)).
        kw, kb = jax.random.split(k)
        bound = 1.0 / jnp.sqrt(jnp.float32(fan_in))
        w = jax.random.uniform(kw, (fan_out, fan_in), jnp.float32, -bound, bound)
        b = jax.random.uniform(kb, (fan_out,), jnp.float32, -bound, bound)
        return w, b

    w1, b1 = init_linear(k1, 512, 512)
    w2, b2 = init_linear(k2, 512, 512)
    w3, b3 = init_linear(k3, 512, 10)

    params = prepare_params(w1, b1, w2, b2, w3, b3)   # hoisted: runs once at load time

    # Default tm; at B=24 the clamp yields tm=16 -> a 2-step grid (exercises the
    # ragged last tile and the >=2-tiles-for-megacore rule).
    out = label_predictor(h, params)
    out = jax.block_until_ready(out)

    # Pure-JAX reference mirroring the kernel's bf16-weight / f32-accumulate math.
    def ref_fwd(h, w1, b1, w2, b2, w3, b3):
        x = h.astype(jnp.bfloat16)
        z1 = jnp.dot(x, w1.T.astype(jnp.bfloat16), preferred_element_type=jnp.float32) + b1
        a1 = jnp.maximum(z1, 0.0).astype(jnp.bfloat16)
        z2 = jnp.dot(a1, w2.T.astype(jnp.bfloat16), preferred_element_type=jnp.float32) + b2
        a2 = jnp.maximum(z2, 0.0).astype(jnp.bfloat16)
        return jnp.dot(a2, w3.T.astype(jnp.bfloat16), preferred_element_type=jnp.float32) + b3

    ref = ref_fwd(h, w1, b1, w2, b2, w3, b3)
    assert out.shape == (B, _OUT)
    assert jnp.allclose(out, ref, atol=2e-2, rtol=2e-2), float(jnp.max(jnp.abs(out - ref)))

    print("KERNEL_OK")
</pallas_src>

<mosaic_0001>
module attributes {stable_mosaic.version = 11 : i64} {
  func.func @_mlp_kernel(%arg0: i32, %arg1: memref<16x512xbf16, #tpu.memory_space<vmem>>, %arg2: memref<512x512xbf16, #tpu.memory_space<vmem>>, %arg3: memref<1x512xf32, #tpu.memory_space<vmem>>, %arg4: memref<512x512xbf16, #tpu.memory_space<vmem>>, %arg5: memref<1x512xf32, #tpu.memory_space<vmem>>, %arg6: memref<512x128xbf16, #tpu.memory_space<vmem>>, %arg7: memref<1x128xf32, #tpu.memory_space<vmem>>, %arg8: memref<16x128xf32, #tpu.memory_space<vmem>>) attributes {dimension_semantics = [#tpu.dimension_semantics<parallel>], iteration_bounds = array<i64: 2>, scalar_prefetch = 0 : i64, scratch_operands = 0 : i64, tpu.core_type = #tpu.core_type<tc>, window_params = [{transform_indices = @transform_0, window_bounds = array<i64: 16, 512>}, {pipeline_mode = #tpu.pipeline_mode<synchronous>, transform_indices = @transform_1, window_bounds = array<i64: 512, 512>}, {pipeline_mode = #tpu.pipeline_mode<synchronous>, transform_indices = @transform_2, window_bounds = array<i64: 1, 512>}, {pipeline_mode = #tpu.pipeline_mode<synchronous>, transform_indices = @transform_3, window_bounds = array<i64: 512, 512>}, {pipeline_mode = #tpu.pipeline_mode<synchronous>, transform_indices = @transform_4, window_bounds = array<i64: 1, 512>}, {pipeline_mode = #tpu.pipeline_mode<synchronous>, transform_indices = @transform_5, window_bounds = array<i64: 512, 128>}, {pipeline_mode = #tpu.pipeline_mode<synchronous>, transform_indices = @transform_6, window_bounds = array<i64: 1, 128>}, {transform_indices = @transform_7, window_bounds = array<i64: 16, 128>}]} {
    %c0 = arith.constant 0 : index
    %c0_0 = arith.constant 0 : index
    %0 = vector.load %arg1[%c0, %c0_0] : memref<16x512xbf16, #tpu.memory_space<vmem>>, vector<16x512xbf16>
    %c0_1 = arith.constant 0 : index
    %c0_2 = arith.constant 0 : index
    %1 = vector.load %arg2[%c0_1, %c0_2] : memref<512x512xbf16, #tpu.memory_space<vmem>>, vector<512x512xbf16>
    %cst = arith.constant dense<0.000000e+00> : vector<16x512xf32>
    %2 = tpu.matmul %0, %1, %cst {dimension_numbers = #tpu.dot_dimension_numbers<[1], [0], [0], [1], [0, 0, 1, 1], [], []>} : vector<16x512xbf16>, vector<512x512xbf16>, vector<16x512xf32> -> vector<16x512xf32>
    %c0_3 = arith.constant 0 : index
    %c0_4 = arith.constant 0 : index
    %3 = vector.load %arg3[%c0_3, %c0_4] : memref<1x512xf32, #tpu.memory_space<vmem>>, vector<1x512xf32>
    %4 = vector.broadcast %3 : vector<1x512xf32> to vector<16x512xf32>
    %5 = arith.addf %2, %4 : vector<16x512xf32>
    %cst_5 = arith.constant 0.000000e+00 : f32
    %6 = vector.broadcast %cst_5 : f32 to vector<16x512xf32>
    %7 = arith.maximumf %5, %6 : vector<16x512xf32>
    %8 = arith.truncf %7 : vector<16x512xf32> to vector<16x512xbf16>
    %c0_6 = arith.constant 0 : index
    %c0_7 = arith.constant 0 : index
    %9 = vector.load %arg4[%c0_6, %c0_7] : memref<512x512xbf16, #tpu.memory_space<vmem>>, vector<512x512xbf16>
    %cst_8 = arith.constant dense<0.000000e+00> : vector<16x512xf32>
    %10 = tpu.matmul %8, %9, %cst_8 {dimension_numbers = #tpu.dot_dimension_numbers<[1], [0], [0], [1], [0, 0, 1, 1], [], []>} : vector<16x512xbf16>, vector<512x512xbf16>, vector<16x512xf32> -> vector<16x512xf32>
    %c0_9 = arith.constant 0 : index
    %c0_10 = arith.constant 0 : index
    %11 = vector.load %arg5[%c0_9, %c0_10] : memref<1x512xf32, #tpu.memory_space<vmem>>, vector<1x512xf32>
    %12 = vector.broadcast %11 : vector<1x512xf32> to vector<16x512xf32>
    %13 = arith.addf %10, %12 : vector<16x512xf32>
    %cst_11 = arith.constant 0.000000e+00 : f32
    %14 = vector.broadcast %cst_11 : f32 to vector<16x512xf32>
    %15 = arith.maximumf %13, %14 : vector<16x512xf32>
    %16 = arith.truncf %15 : vector<16x512xf32> to vector<16x512xbf16>
    %c0_12 = arith.constant 0 : index
    %c0_13 = arith.constant 0 : index
    %17 = vector.load %arg6[%c0_12, %c0_13] : memref<512x128xbf16, #tpu.memory_space<vmem>>, vector<512x128xbf16>
    %cst_14 = arith.constant dense<0.000000e+00> : vector<16x128xf32>
    %18 = tpu.matmul %16, %17, %cst_14 {dimension_numbers = #tpu.dot_dimension_numbers<[1], [0], [0], [1], [0, 0, 1, 1], [], []>} : vector<16x512xbf16>, vector<512x128xbf16>, vector<16x128xf32> -> vector<16x128xf32>
    %c0_15 = arith.constant 0 : index
    %c0_16 = arith.constant 0 : index
    %19 = vector.load %arg7[%c0_15, %c0_16] : memref<1x128xf32, #tpu.memory_space<vmem>>, vector<1x128xf32>
    %20 = vector.broadcast %19 : vector<1x128xf32> to vector<16x128xf32>
    %21 = arith.addf %18, %20 : vector<16x128xf32>
    %c0_17 = arith.constant 0 : index
    %c0_18 = arith.constant 0 : index
    %22 = vector.load %arg8[%c0_17, %c0_18] : memref<16x128xf32, #tpu.memory_space<vmem>>, vector<16x128xf32>
    tpu.vector_store %arg8[%c0_17, %c0_18], %21 {strides = array<i32>} : memref<16x128xf32, #tpu.memory_space<vmem>>, vector<16x128xf32>,
    return
  }
  func.func @transform_0(%arg0: i32) -> (i32, i32) {
    %c0_i32 = arith.constant 0 : i32
    %c0_i32_0 = arith.constant 0 : i32
    return %arg0, %c0_i32 : i32, i32
  }
  func.func @transform_1(%arg0: i32) -> (i32, i32) {
    %c0_i32 = arith.constant 0 : i32
    %c0_i32_0 = arith.constant 0 : i32
    %c0_i32_1 = arith.constant 0 : i32
    return %c0_i32, %c0_i32_0 : i32, i32
  }
  func.func @transform_2(%arg0: i32) -> (i32, i32) {
    %c0_i32 = arith.constant 0 : i32
    %c0_i32_0 = arith.constant 0 : i32
    %c0_i32_1 = arith.constant 0 : i32
    return %c0_i32, %c0_i32_0 : i32, i32
  }
  func.func @transform_3(%arg0: i32) -> (i32, i32) {
    %c0_i32 = arith.constant 0 : i32
    %c0_i32_0 = arith.constant 0 : i32
    %c0_i32_1 = arith.constant 0 : i32
    return %c0_i32, %c0_i32_0 : i32, i32
  }
  func.func @transform_4(%arg0: i32) -> (i32, i32) {
    %c0_i32 = arith.constant 0 : i32
    %c0_i32_0 = arith.constant 0 : i32
    %c0_i32_1 = arith.constant 0 : i32
    return %c0_i32, %c0_i32_0 : i32, i32
  }
  func.func @transform_5(%arg0: i32) -> (i32, i32) {
    %c0_i32 = arith.constant 0 : i32
    %c0_i32_0 = arith.constant 0 : i32
    %c0_i32_1 = arith.constant 0 : i32
    return %c0_i32, %c0_i32_0 : i32, i32
  }
  func.func @transform_6(%arg0: i32) -> (i32, i32) {
    %c0_i32 = arith.constant 0 : i32
    %c0_i32_0 = arith.constant 0 : i32
    %c0_i32_1 = arith.constant 0 : i32
    return %c0_i32, %c0_i32_0 : i32, i32
  }
  func.func @transform_7(%arg0: i32) -> (i32, i32) {
    %c0_i32 = arith.constant 0 : i32
    %c0_i32_0 = arith.constant 0 : i32
    return %arg0, %c0_i32 : i32, i32
  }
}

</mosaic_0001>

<llo_original>
// kernel: tpu_custom_call.1
$region0: #{tpu_custom_call.1}
  #allocation0 [shape = 'u32[]', space=smem, size = 0x4, offset = 0x4, fixed_abs, tag = 'smem constant byte address 0x4 - core index']
  #allocation1 [shape = 'u32[144,128]{1,0:T(1,128)}', space=vmem, size = 0x12000, scoped, tag = 'internal scratch']
  %s0 = inlined_call_operand.hbm [shape: bf16[24,512], index: 0, kind: input, shape index: {}]
  %s1 = inlined_call_operand.hbm [shape: bf16[512,512], index: 1, kind: input, shape index: {}]
  %s2 = inlined_call_operand.vmem [shape: f32[1,512], index: 2, kind: input, shape index: {}]
  %s3 = inlined_call_operand.hbm [shape: bf16[512,512], index: 3, kind: input, shape index: {}]
  %s4 = inlined_call_operand.vmem [shape: f32[1,512], index: 4, kind: input, shape index: {}]
  %s5 = inlined_call_operand.hbm [shape: bf16[512,128], index: 5, kind: input, shape index: {}]
  %s6 = inlined_call_operand.vmem [shape: f32[1,128], index: 6, kind: input, shape index: {}]
  %s7 = inlined_call_operand.hbm [shape: f32[24,128], index: 7, kind: output, shape index: {}]
  %s8 = sld [smem:[#allocation0]]
  $region77: #{tpu_custom_call.1} parent=0
    _
  %s10 = ssub.s32 1, %s8
  %s11 = scalar_select 0, %s10, %s8
  $region1: #{tpu_custom_call.1} parent=0
    #allocation2 [shape = 'u8[32768]{0}', space=vmem, size = 0x8000, scoped, tag = 'input window, operand 0']
    #allocation3 [shape = 's32[2]{0}', space=sflag, size = 0x8, scoped, tag = 'scoped memory for tpu_custom_call.1']
    #allocation4 [shape = 's32[2]{0}', space=sflag, size = 0x8, scoped, tag = 'scoped memory for tpu_custom_call.1']
    #allocation5 [shape = 'u8[524288]{0}', space=vmem, size = 0x80000, scoped, tag = 'input window, operand 1, single buffered']
    #allocation6 [shape = 's32[1]{0}', space=sflag, size = 0x4, scoped, tag = 'scoped memory for tpu_custom_call.1']
    #allocation7 [shape = 'u8[524288]{0}', space=vmem, size = 0x80000, scoped, tag = 'input window, operand 3, single buffered']
    #allocation8 [shape = 'u8[131072]{0}', space=vmem, size = 0x20000, scoped, tag = 'input window, operand 5, single buffered']
    #allocation9 [shape = 's32[1]{0}', space=sflag, size = 0x4, scoped, tag = 'scoped memory for tpu_custom_call.1']
    #allocation10 [shape = 'u8[16384]{0}', space=vmem, size = 0x4000, scoped, tag = 'output window, operand 0']
    %12 = vsyncpa [#allocation3], 0
    %s13 = scalar_lea.sflag [#allocation3], 1
    %14 = vsyncpa %s13, 0
    %15 = vsyncpa [#allocation6], 0
    %16 = vsyncpa [#allocation9], 0
    %17 = vsyncpa [#allocation4], 0
    %s18 = scalar_lea.sflag [#allocation4], 1
    %19 = vsyncpa %s18, 0
    loop: start=0, step=1, limit=4
    $region2: #{tpu_custom_call.1} parent=1 // loop_pre_header
      _
    $region3: #{tpu_custom_call.1} parent=1 // loop_header
      %s21 = sphi 0, %s25
      %p22 = scmp.ge.s32.totalorder %s21, 4
      %s31 = sphi 0, %s33
      %s34 = sphi 0, %s31
      %s35 = sphi 0, %s34
      %s51 = sphi 0, %s35
      %s55 = sphi 0, %s55
      %s57 = sphi 0, %s55
      %s58 = sphi 0, %s57
      %s72 = sphi 0, %s58
      %s76 = sphi 0, %s76
      %s78 = sphi 0, %s76
      %s79 = sphi 0, %s78
      %s93 = sphi 0, %s79
      %s97 = sphi 0, %s97
      %s99 = sphi 0, %s97
      %s100 = sphi 0, %s99
      %s114 = sphi 0, %s100
      %s118 = sphi 0, %s118
      %s120 = sphi 0, %s118
      %s121 = sphi 0, %s120
      %s135 = sphi 0, %s121
      %s139 = sphi 0, %s139
      %s141 = sphi 0, %s139
      %s142 = sphi 0, %s141
      %s156 = sphi 0, %s142
      %s160 = sphi 0, %s160
      %s162 = sphi 0, %s160
      %s163 = sphi 0, %s162
      %s177 = sphi 0, %s163
      %s183 = sphi 0, %s185
      %s186 = sphi 0, %s183
      %s187 = sphi 0, %s186
      %s203 = sphi 0, %s187
    $region4: #{tpu_custom_call.1} parent=1 // loop_header_branch
      %24 = sbr.rel (%p22) target = $region8
    $region5: #{tpu_custom_call.1} parent=1 // loop_body
      %s26 = ssub.s32 %s21, 1
      %s27 = ssub.s32 %s21, 2
      %s28 = sadd.s32 %s21, 1
      %s29 = ssub.s32 %s21, %s28
      %p30 = scmp.eq.s32.totalorder %s29, 0
      %s32 = sadd.s32 %s31, 1
      %s33 = scalar_select %p30, %s31, %s32
      %p36 = pneg %p30
      %p37 = scmp.eq.s32.totalorder %s21, 1
      %p38 = por %p36, %p37
      %p39 = scmp.ne.s32.totalorder %s31, %s34
      %p40 = scmp.eq.s32.totalorder %s21, 0
      %p41 = por %p39, %p40
      %p42 = scmp.ne.s32.totalorder %s31, %s34
      %p43 = scmp.eq.s32.totalorder %s26, 1
      %p44 = por %p42, %p43
      %p45 = scmp.ne.s32.totalorder %s34, %s35
      %p46 = scmp.eq.s32.totalorder %s26, 0
      %p47 = por %p45, %p46
      %p48 = scmp.ne.s32.totalorder %s34, %s35
      %p49 = scmp.eq.s32.totalorder %s27, 1
      %p50 = por %p48, %p49
      %p52 = scmp.ne.s32.totalorder %s35, %s51
      %p53 = scmp.eq.s32.totalorder %s27, 0
      %p54 = por %p52, %p53
      %s56 = sadd.s32 %s55, 1
      %p59 = scmp.eq.s32.totalorder %s21, 1
      %p60 = scmp.ne.s32.totalorder %s55, %s57
      %p61 = scmp.eq.s32.totalorder %s21, 0
      %p62 = por %p60, %p61
      %p63 = scmp.ne.s32.totalorder %s55, %s57
      %p64 = scmp.eq.s32.totalorder %s26, 1
      %p65 = por %p63, %p64
      %p66 = scmp.ne.s32.totalorder %s57, %s58
      %p67 = scmp.eq.s32.totalorder %s26, 0
      %p68 = por %p66, %p67
      %p69 = scmp.ne.s32.totalorder %s57, %s58
      %p70 = scmp.eq.s32.totalorder %s27, 1
      %p71 = por %p69, %p70
      %p73 = scmp.ne.s32.totalorder %s58, %s72
      %p74 = scmp.eq.s32.totalorder %s27, 0
      %p75 = por %p73, %p74
      %s77 = sadd.s32 %s76, 1
      %p80 = scmp.eq.s32.totalorder %s21, 1
      %p81 = scmp.ne.s32.totalorder %s76, %s78
      %p82 = scmp.eq.s32.totalorder %s21, 0
      %p83 = por %p81, %p82
      %p84 = scmp.ne.s32.totalorder %s76, %s78
      %p85 = scmp.eq.s32.totalorder %s26, 1
      %p86 = por %p84, %p85
      %p87 = scmp.ne.s32.totalorder %s78, %s79
      %p88 = scmp.eq.s32.totalorder %s26, 0
      %p89 = por %p87, %p88
      %p90 = scmp.ne.s32.totalorder %s78, %s79
      %p91 = scmp.eq.s32.totalorder %s27, 1
      %p92 = por %p90, %p91
      %p94 = scmp.ne.s32.totalorder %s79, %s93
      %p95 = scmp.eq.s32.totalorder %s27, 0
      %p96 = por %p94, %p95
      %s98 = sadd.s32 %s97, 1
      %p101 = scmp.eq.s32.totalorder %s21, 1
      %p102 = scmp.ne.s32.totalorder %s97, %s99
      %p103 = scmp.eq.s32.totalorder %s21, 0
      %p104 = por %p102, %p103
      %p105 = scmp.ne.s32.totalorder %s97, %s99
      %p106 = scmp.eq.s32.totalorder %s26, 1
      %p107 = por %p105, %p106
      %p108 = scmp.ne.s32.totalorder %s99, %s100
      %p109 = scmp.eq.s32.totalorder %s26, 0
      %p110 = por %p108, %p109
      %p111 = scmp.ne.s32.totalorder %s99, %s100
      %p112 = scmp.eq.s32.totalorder %s27, 1
      %p113 = por %p111, %p112
      %p115 = scmp.ne.s32.totalorder %s100, %s114
      %p116 = scmp.eq.s32.totalorder %s27, 0
      %p117 = por %p115, %p116
      %s119 = sadd.s32 %s118, 1
      %p122 = scmp.eq.s32.totalorder %s21, 1
      %p123 = scmp.ne.s32.totalorder %s118, %s120
      %p124 = scmp.eq.s32.totalorder %s21, 0
      %p125 = por %p123, %p124
      %p126 = scmp.ne.s32.totalorder %s118, %s120
      %p127 = scmp.eq.s32.totalorder %s26, 1
      %p128 = por %p126, %p127
      %p129 = scmp.ne.s32.totalorder %s120, %s121
      %p130 = scmp.eq.s32.totalorder %s26, 0
      %p131 = por %p129, %p130
      %p132 = scmp.ne.s32.totalorder %s120, %s121
      %p133 = scmp.eq.s32.totalorder %s27, 1
      %p134 = por %p132, %p133
      %p136 = scmp.ne.s32.totalorder %s121, %s135
      %p137 = scmp.eq.s32.totalorder %s27, 0
      %p138 = por %p136, %p137
      %s140 = sadd.s32 %s139, 1
      %p143 = scmp.eq.s32.totalorder %s21, 1
      %p144 = scmp.ne.s32.totalorder %s139, %s141
      %p145 = scmp.eq.s32.totalorder %s21, 0
      %p146 = por %p144, %p145
      %p147 = scmp.ne.s32.totalorder %s139, %s141
      %p148 = scmp.eq.s32.totalorder %s26, 1
      %p149 = por %p147, %p148
      %p150 = scmp.ne.s32.totalorder %s141, %s142
      %p151 = scmp.eq.s32.totalorder %s26, 0
      %p152 = por %p150, %p151
      %p153 = scmp.ne.s32.totalorder %s141, %s142
      %p154 = scmp.eq.s32.totalorder %s27, 1
      %p155 = por %p153, %p154
      %p157 = scmp.ne.s32.totalorder %s142, %s156
      %p158 = scmp.eq.s32.totalorder %s27, 0
      %p159 = por %p157, %p158
      %s161 = sadd.s32 %s160, 1
      %p164 = scmp.eq.s32.totalorder %s21, 1
      %p165 = scmp.ne.s32.totalorder %s160, %s162
      %p166 = scmp.eq.s32.totalorder %s21, 0
      %p167 = por %p165, %p166
      %p168 = scmp.ne.s32.totalorder %s160, %s162
      %p169 = scmp.eq.s32.totalorder %s26, 1
      %p170 = por %p168, %p169
      %p171 = scmp.ne.s32.totalorder %s162, %s163
      %p172 = scmp.eq.s32.totalorder %s26, 0
      %p173 = por %p171, %p172
      %p174 = scmp.ne.s32.totalorder %s162, %s163
      %p175 = scmp.eq.s32.totalorder %s27, 1
      %p176 = por %p174, %p175
      %p178 = scmp.ne.s32.totalorder %s163, %s177
      %p179 = scmp.eq.s32.totalorder %s27, 0
      %p180 = por %p178, %p179
      %s181 = ssub.s32 %s21, %s28
      %p182 = scmp.eq.s32.totalorder %s181, 0
      %s184 = sadd.s32 %s183, 1
      %s185 = scalar_select %p182, %s183, %s184
      %p188 = pneg %p182
      %p189 = scmp.eq.s32.totalorder %s21, 1
      %p190 = por %p188, %p189
      %p191 = scmp.ne.s32.totalorder %s183, %s186
      %p192 = scmp.eq.s32.totalorder %s21, 0
      %p193 = por %p191, %p192
      %p194 = scmp.ne.s32.totalorder %s183, %s186
      %p195 = scmp.eq.s32.totalorder %s26, 1
      %p196 = por %p194, %p195
      %p197 = scmp.ne.s32.totalorder %s186, %s187
      %p198 = scmp.eq.s32.totalorder %s26, 0
      %p199 = por %p197, %p198
      %p200 = scmp.ne.s32.totalorder %s186, %s187
      %p201 = scmp.eq.s32.totalorder %s27, 1
      %p202 = por %p200, %p201
      %p204 = scmp.ne.s32.totalorder %s187, %s203
      %p205 = scmp.eq.s32.totalorder %s27, 0
      %p206 = por %p204, %p205
      %p207 = scmp.le.s32.totalorder 1, %s21
      %p208 = scmp.lt.s32.totalorder %s21, 3
      %p209 = pnand %p207, %p208
      %p210 = pneg %p209
      // Predicated region
      $region9: #{tpu_custom_call.1} parent=5 // pred_check
        _
      $region10: #{tpu_custom_call.1} parent=5 // pred_check_branch
        %212 = sbr.rel (%p209) target = $region12
      $region11: #{tpu_custom_call.1} parent=5 // pred_region
        %s213 = ssub.s32 %s21, 1
        // Predicated region
        $region13: #{tpu_custom_call.1} parent=11 // pred_check
          %p214 = pneg %p68
        $region14: #{tpu_custom_call.1} parent=11 // pred_check_branch
          %216 = sbr.rel (%p214) target = $region16
        $region15: #{tpu_custom_call.1} parent=11 // pred_region
          %s218 = ssub.s32 16384, 16384
          %219 = vsyncadd [#allocation6], %s218
          %s220 = sshll.u32 [#allocation5], 4
          %s221 = int_to_ptr.vmem [resolvable:$true] %s220
          %226 = dma.hbm_to_vmem [thread:$0]  %s1, 16384, %s221, [#allocation6], 256, 256, 16
        $region16: #{tpu_custom_call.1} parent=11 // pred_fallthru
          _
        // Predicated region
        $region17: #{tpu_custom_call.1} parent=11 // pred_check
          %p227 = pneg %p89
        $region18: #{tpu_custom_call.1} parent=11 // pred_check_branch
          %229 = sbr.rel (%p227) target = $region20
        $region19: #{tpu_custom_call.1} parent=11 // pred_region
          _
        $region20: #{tpu_custom_call.1} parent=11 // pred_fallthru
          _
        // Predicated region
        $region21: #{tpu_custom_call.1} parent=11 // pred_check
          %p230 = pneg %p110
        $region22: #{tpu_custom_call.1} parent=11 // pred_check_branch
          %232 = sbr.rel (%p230) target = $region24
        $region23: #{tpu_custom_call.1} parent=11 // pred_region
          %s234 = ssub.s32 16384, 16384
          %235 = vsyncadd [#allocation6], %s234
          %s236 = sshll.u32 [#allocation7], 4
          %s237 = int_to_ptr.vmem [resolvable:$true] %s236
          %242 = dma.hbm_to_vmem [thread:$0]  %s3, 16384, %s237, [#allocation6], 256, 256, 16
        $region24: #{tpu_custom_call.1} parent=11 // pred_fallthru
          _
        // Predicated region
        $region25: #{tpu_custom_call.1} parent=11 // pred_check
          %p243 = pneg %p131
        $region26: #{tpu_custom_call.1} parent=11 // pred_check_branch
          %245 = sbr.rel (%p243) target = $region28
        $region27: #{tpu_custom_call.1} parent=11 // pred_region
          _
        $region28: #{tpu_custom_call.1} parent=11 // pred_fallthru
          _
        // Predicated region
        $region29: #{tpu_custom_call.1} parent=11 // pred_check
          %p246 = pneg %p152
        $region30: #{tpu_custom_call.1} parent=11 // pred_check_branch
          %248 = sbr.rel (%p246) target = $region32
        $region31: #{tpu_custom_call.1} parent=11 // pred_region
          %s250 = ssub.s32 4096, 4096
          %251 = vsyncadd [#allocation9], %s250
          %s252 = sshll.u32 [#allocation8], 4
          %s253 = int_to_ptr.vmem [resolvable:$true] %s252
          %258 = dma.hbm_to_vmem [thread:$0]  %s5, 4096, %s253, [#allocation9], 64, 64, 4
        $region32: #{tpu_custom_call.1} parent=11 // pred_fallthru
          _
        // Predicated region
        $region33: #{tpu_custom_call.1} parent=11 // pred_check
          %p259 = pneg %p173
        $region34: #{tpu_custom_call.1} parent=11 // pred_check_branch
          %261 = sbr.rel (%p259) target = $region36
        $region35: #{tpu_custom_call.1} parent=11 // pred_region
          _
        $region36: #{tpu_custom_call.1} parent=11 // pred_fallthru
          _
      $region12: #{tpu_custom_call.1} parent=5 // pred_fallthru
        _
      %p262 = scmp.lt.s32.totalorder %s21, 2
      // Predicated region
      $region37: #{tpu_custom_call.1} parent=5 // pred_check
        %p263 = pneg %p262
      $region38: #{tpu_custom_call.1} parent=5 // pred_check_branch
        %265 = sbr.rel (%p263) target = $region40
      $region39: #{tpu_custom_call.1} parent=5 // pred_region
        // Predicated region
        $region41: #{tpu_custom_call.1} parent=39 // pred_check
          %p266 = pneg %p41
        $region42: #{tpu_custom_call.1} parent=39 // pred_check_branch
          %268 = sbr.rel (%p266) target = $region44
        $region43: #{tpu_custom_call.1} parent=39 // pred_region
          %s269 = sand.u32 %s31, 1
          %s270 = scalar_lea.sflag [#allocation3], %s269
          %s271 = sand.u32 %s31, 1
          %s272 = smul.addr %s271, 32
          %s273 = scalar_lea.vmem [#allocation2], %s272
          %s274 = smul.u32 2, %s21
          %s275 = ssub.s32 3, %s274
          %p276 = scmp.lt.s32.totalorder %s275, 2
          %s277 = scalar_select %p276, %s275, 2
          %s278 = smul.u32 64, %s277
          %s279 = smul.u32 %s278, 4
          %s281 = ssub.s32 512, %s279
          %282 = vsyncadd %s270, %s281
          %p283 = scmp.ne.s32.totalorder 0, %s279
          %s284 = smul.addr %s274, 4
          %s285 = smul.addr %s284, 64
          %s286 = scalar_lea.hbm %s0, %s285
          %s287 = smul.u32 16, %s277
          %s288 = sshll.u32 %s273, 4
          %s289 = int_to_ptr.vmem [resolvable:$true] %s288
          %s290 = sshll.u32 %s287, 4
          %294 = dma.hbm_to_vmem [thread:$0]  (%p283), %s286, %s290, %s289, %s270, 256, 256, 16
        $region44: #{tpu_custom_call.1} parent=39 // pred_fallthru
          _
      $region40: #{tpu_custom_call.1} parent=5 // pred_fallthru
        _
      %p295 = scmp.le.s32.totalorder 1, %s21
      %p296 = scmp.lt.s32.totalorder %s21, 3
      %p297 = pnand %p295, %p296
      %p298 = pneg %p297
      // Predicated region
      $region45: #{tpu_custom_call.1} parent=5 // pred_check
        _
      $region46: #{tpu_custom_call.1} parent=5 // pred_check_branch
        %300 = sbr.rel (%p297) target = $region48
      $region47: #{tpu_custom_call.1} parent=5 // pred_region
        %s301 = ssub.s32 %s21, 1
        %s302 = sand.u32 %s34, 1
        %s303 = scalar_lea.sflag [#allocation3], %s302
        %s304 = sand.u32 %s34, 1
        %s305 = smul.addr %s304, 32
        %s306 = scalar_lea.vmem [#allocation2], %s305
        // Predicated region
        $region49: #{tpu_custom_call.1} parent=47 // pred_check
          %p307 = pneg %p47
        $region50: #{tpu_custom_call.1} parent=47 // pred_check_branch
          %309 = sbr.rel (%p307) target = $region52
        $region51: #{tpu_custom_call.1} parent=47 // pred_region
          %310 = dma.done %s303, 512
        $region52: #{tpu_custom_call.1} parent=47 // pred_fallthru
          _
        // Predicated region
        $region53: #{tpu_custom_call.1} parent=47 // pred_check
          %p311 = pneg %p68
        $region54: #{tpu_custom_call.1} parent=47 // pred_check_branch
          %313 = sbr.rel (%p311) target = $region56
        $region55: #{tpu_custom_call.1} parent=47 // pred_region
          %314 = dma.done [#allocation6], 16384
        $region56: #{tpu_custom_call.1} parent=47 // pred_fallthru
          _
        // Predicated region
        $region57: #{tpu_custom_call.1} parent=47 // pred_check
          %p315 = pneg %p110
        $region58: #{tpu_custom_call.1} parent=47 // pred_check_branch
          %317 = sbr.rel (%p315) target = $region60
        $region59: #{tpu_custom_call.1} parent=47 // pred_region
          %318 = dma.done [#allocation6], 16384
        $region60: #{tpu_custom_call.1} parent=47 // pred_fallthru
          _
        // Predicated region
        $region61: #{tpu_custom_call.1} parent=47 // pred_check
          %p319 = pneg %p152
        $region62: #{tpu_custom_call.1} parent=47 // pred_check_branch
          %321 = sbr.rel (%p319) target = $region64
        $region63: #{tpu_custom_call.1} parent=47 // pred_region
          %322 = dma.done [#allocation9], 4096
        $region64: #{tpu_custom_call.1} parent=47 // pred_fallthru
          _
        %s323 = sand.u32 %s34, 1
        %s324 = scalar_lea.sflag [#allocation3], %s323
        %s325 = sand.u32 %s34, 1
        %s326 = smul.addr %s325, 32
        %s327 = scalar_lea.vmem [#allocation2], %s326
        %p328 = pneg %p47
        %p329 = pneg %p44
        %p330 = pneg %p68
        %p331 = pneg %p65
        %p332 = pneg %p89
        %p333 = pneg %p86
        %p334 = pneg %p110
        %p335 = pneg %p107
        %p336 = pneg %p131
        %p337 = pneg %p128
        %p338 = pneg %p152
        %p339 = pneg %p149
        %p340 = pneg %p173
        %p341 = pneg %p170
        %p342 = pneg %p199
        %p343 = pneg %p196
        %s344 = sand.u32 %s186, 1
        %s345 = scalar_lea.sflag [#allocation4], %s344
        %s346 = sand.u32 %s186, 1
        %s347 = smul.addr %s346, 16
        %s348 = scalar_lea.vmem [#allocation10], %s347
        %s349 = smul.u32 2, %s26
        %s350 = ssub.s32 3, %s349
        %p351 = scmp.lt.s32.totalorder %s350, 2
        %s352 = scalar_select %p351, %s350, 2
        %s353 = smul.u32 64, %s352
        %s354 = smul.u32 %s353, 4
        %s355 = smul.u32 2, %s26
        %s356 = ssub.s32 3, %s355
        %p357 = scmp.lt.s32.totalorder %s356, 2
        %s358 = scalar_select %p357, %s356, 2
        %s359 = smul.u32 128, %s358
        %v361 = vld [vmem:[%s306] sm:$0xff]
        %v362 = vld [vmem:[%s306 + $0x8] sm:$0xff]
        %v363 = vld [vmem:[%s306 + $0x10] sm:$0xff]
        %v364 = vld [vmem:[%s306 + $0x18] sm:$0xff]
        %v365 = vld [vmem:[#allocation5] sm:$0xff]
        %v366 = vld [vmem:[#allocation5 + $0x8] sm:$0xff]
        %v367 = vld [vmem:[#allocation5 + $0x10] sm:$0xff]
        %v368 = vld [vmem:[#allocation5 + $0x18] sm:$0xff]
        %v369 = vld [vmem:[#allocation5 + $0x20] sm:$0xff]
        %v370 = vld [vmem:[#allocation5 + $0x28] sm:$0xff]
        %v371 = vld [vmem:[#allocation5 + $0x30] sm:$0xff]
        %v372 = vld [vmem:[#allocation5 + $0x38] sm:$0xff]
        %v373 = vld [vmem:[#allocation5 + $0x40] sm:$0xff]
        %v374 = vld [vmem:[#allocation5 + $0x48] sm:$0xff]
        %v375 = vld [vmem:[#allocation5 + $0x50] sm:$0xff]
        %v376 = vld [vmem:[#allocation5 + $0x58] sm:$0xff]
        %v377 = vld [vmem:[#allocation5 + $0x60] sm:$0xff]
        %v378 = vld [vmem:[#allocation5 + $0x68] sm:$0xff]
        %v379 = vld [vmem:[#allocation5 + $0x70] sm:$0xff]
        %v380 = vld [vmem:[#allocation5 + $0x78] sm:$0xff]
        %v381 = vld [vmem:[#allocation5 + $0x80] sm:$0xff]
        %v382 = vld [vmem:[#allocation5 + $0x88] sm:$0xff]
        %v383 = vld [vmem:[#allocation5 + $0x90] sm:$0xff]
        %v384 = vld [vmem:[#allocation5 + $0x98] sm:$0xff]
        %v385 = vld [vmem:[#allocation5 + $0xa0] sm:$0xff]
        %v386 = vld [vmem:[#allocation5 + $0xa8] sm:$0xff]
        %v387 = vld [vmem:[#allocation5 + $0xb0] sm:$0xff]
        %v388 = vld [vmem:[#allocation5 + $0xb8] sm:$0xff]
        %v389 = vld [vmem:[#allocation5 + $0xc0] sm:$0xff]
        %v390 = vld [vmem:[#allocation5 + $0xc8] sm:$0xff]
        %v391 = vld [vmem:[#allocation5 + $0xd0] sm:$0xff]
        %v392 = vld [vmem:[#allocation5 + $0xd8] sm:$0xff]
        %v393 = vld [vmem:[#allocation5 + $0xe0] sm:$0xff]
        %v394 = vld [vmem:[#allocation5 + $0xe8] sm:$0xff]
        %v395 = vld [vmem:[#allocation5 + $0xf0] sm:$0xff]
        %v396 = vld [vmem:[#allocation5 + $0xf8] sm:$0xff]
        %v397 = vld [vmem:[#allocation5 + $0x100] sm:$0xff]
        %v398 = vld [vmem:[#allocation5 + $0x108] sm:$0xff]
        %v399 = vld [vmem:[#allocation5 + $0x110] sm:$0xff]
        %v400 = vld [vmem:[#allocation5 + $0x118] sm:$0xff]
        %v401 = vld [vmem:[#allocation5 + $0x120] sm:$0xff]
        %v402 = vld [vmem:[#allocation5 + $0x128] sm:$0xff]
        %v403 = vld [vmem:[#allocation5 + $0x130] sm:$0xff]
        %v404 = vld [vmem:[#allocation5 + $0x138] sm:$0xff]
        %v405 = vld [vmem:[#allocation5 + $0x140] sm:$0xff]
        %v406 = vld [vmem:[#allocation5 + $0x148] sm:$0xff]
        %v407 = vld [vmem:[#allocation5 + $0x150] sm:$0xff]
        %v408 = vld [vmem:[#allocation5 + $0x158] sm:$0xff]
        %v409 = vld [vmem:[#allocation5 + $0x160] sm:$0xff]
        %v410 = vld [vmem:[#allocation5 + $0x168] sm:$0xff]
        %v411 = vld [vmem:[#allocation5 + $0x170] sm:$0xff]
        %v412 = vld [vmem:[#allocation5 + $0x178] sm:$0xff]
        %v413 = vld [vmem:[#allocation5 + $0x180] sm:$0xff]
        %v414 = vld [vmem:[#allocation5 + $0x188] sm:$0xff]
        %v415 = vld [vmem:[#allocation5 + $0x190] sm:$0xff]
        %v416 = vld [vmem:[#allocation5 + $0x198] sm:$0xff]
        %v417 = vld [vmem:[#allocation5 + $0x1a0] sm:$0xff]
        %v418 = vld [vmem:[#allocation5 + $0x1a8] sm:$0xff]
        %v419 = vld [vmem:[#allocation5 + $0x1b0] sm:$0xff]
        %v420 = vld [vmem:[#allocation5 + $0x1b8] sm:$0xff]
        %v421 = vld [vmem:[#allocation5 + $0x1c0] sm:$0xff]
        %v422 = vld [vmem:[#allocation5 + $0x1c8] sm:$0xff]
        %v423 = vld [vmem:[#allocation5 + $0x1d0] sm:$0xff]
        %v424 = vld [vmem:[#allocation5 + $0x1d8] sm:$0xff]
        %v425 = vld [vmem:[#allocation5 + $0x1e0] sm:$0xff]
        %v426 = vld [vmem:[#allocation5 + $0x1e8] sm:$0xff]
        %v427 = vld [vmem:[#allocation5 + $0x1f0] sm:$0xff]
        %v428 = vld [vmem:[#allocation5 + $0x1f8] sm:$0xff]
        %v429 = vld [vmem:[#allocation5 + $0x200] sm:$0xff]
        %v430 = vld [vmem:[#allocation5 + $0x208] sm:$0xff]
        %v431 = vld [vmem:[#allocation5 + $0x210] sm:$0xff]
        %v432 = vld [vmem:[#allocation5 + $0x218] sm:$0xff]
        %v433 = vld [vmem:[#allocation5 + $0x220] sm:$0xff]
        %v434 = vld [vmem:[#allocation5 + $0x228] sm:$0xff]
        %v435 = vld [vmem:[#allocation5 + $0x230] sm:$0xff]
        %v436 = vld [vmem:[#allocation5 + $0x238] sm:$0xff]
        %v437 = vld [vmem:[#allocation5 + $0x240] sm:$0xff]
        %v438 = vld [vmem:[#allocation5 + $0x248] sm:$0xff]
        %v439 = vld [vmem:[#allocation5 + $0x250] sm:$0xff]
        %v440 = vld [vmem:[#allocation5 + $0x258] sm:$0xff]
        %v441 = vld [vmem:[#allocation5 + $0x260] sm:$0xff]
        %v442 = vld [vmem:[#allocation5 + $0x268] sm:$0xff]
        %v443 = vld [vmem:[#allocation5 + $0x270] sm:$0xff]
        %v444 = vld [vmem:[#allocation5 + $0x278] sm:$0xff]
        %v445 = vld [vmem:[#allocation5 + $0x280] sm:$0xff]
        %v446 = vld [vmem:[#allocation5 + $0x288] sm:$0xff]
        %v447 = vld [vmem:[#allocation5 + $0x290] sm:$0xff]
        %v448 = vld [vmem:[#allocation5 + $0x298] sm:$0xff]
        %v449 = vld [vmem:[#allocation5 + $0x2a0] sm:$0xff]
        %v450 = vld [vmem:[#allocation5 + $0x2a8] sm:$0xff]
        %v451 = vld [vmem:[#allocation5 + $0x2b0] sm:$0xff]
        %v452 = vld [vmem:[#allocation5 + $0x2b8] sm:$0xff]
        %v453 = vld [vmem:[#allocation5 + $0x2c0] sm:$0xff]
        %v454 = vld [vmem:[#allocation5 + $0x2c8] sm:$0xff]
        %v455 = vld [vmem:[#allocation5 + $0x2d0] sm:$0xff]
        %v456 = vld [vmem:[#allocation5 + $0x2d8] sm:$0xff]
        %v457 = vld [vmem:[#allocation5 + $0x2e0] sm:$0xff]
        %v458 = vld [vmem:[#allocation5 + $0x2e8] sm:$0xff]
        %v459 = vld [vmem:[#allocation5 + $0x2f0] sm:$0xff]
        %v460 = vld [vmem:[#allocation5 + $0x2f8] sm:$0xff]
        %v461 = vld [vmem:[#allocation5 + $0x300] sm:$0xff]
        %v462 = vld [vmem:[#allocation5 + $0x308] sm:$0xff]
        %v463 = vld [vmem:[#allocation5 + $0x310] sm:$0xff]
        %v464 = vld [vmem:[#allocation5 + $0x318] sm:$0xff]
        %v465 = vld [vmem:[#allocation5 + $0x320] sm:$0xff]
        %v466 = vld [vmem:[#allocation5 + $0x328] sm:$0xff]
        %v467 = vld [vmem:[#allocation5 + $0x330] sm:$0xff]
        %v468 = vld [vmem:[#allocation5 + $0x338] sm:$0xff]
        %v469 = vld [vmem:[#allocation5 + $0x340] sm:$0xff]
        %v470 = vld [vmem:[#allocation5 + $0x348] sm:$0xff]
        %v471 = vld [vmem:[#allocation5 + $0x350] sm:$0xff]
        %v472 = vld [vmem:[#allocation5 + $0x358] sm:$0xff]
        %v473 = vld [vmem:[#allocation5 + $0x360] sm:$0xff]
        %v474 = vld [vmem:[#allocation5 + $0x368] sm:$0xff]
        %v475 = vld [vmem:[#allocation5 + $0x370] sm:$0xff]
        %v476 = vld [vmem:[#allocation5 + $0x378] sm:$0xff]
        %v477 = vld [vmem:[#allocation5 + $0x380] sm:$0xff]
        %v478 = vld [vmem:[#allocation5 + $0x388] sm:$0xff]
        %v479 = vld [vmem:[#allocation5 + $0x390] sm:$0xff]
        %v480 = vld [vmem:[#allocation5 + $0x398] sm:$0xff]
        %v481 = vld [vmem:[#allocation5 + $0x3a0] sm:$0xff]
        %v482 = vld [vmem:[#allocation5 + $0x3a8] sm:$0xff]
        %v483 = vld [vmem:[#allocation5 + $0x3b0] sm:$0xff]
        %v484 = vld [vmem:[#allocation5 + $0x3b8] sm:$0xff]
        %v485 = vld [vmem:[#allocation5 + $0x3c0] sm:$0xff]
        %v486 = vld [vmem:[#allocation5 + $0x3c8] sm:$0xff]
        %v487 = vld [vmem:[#allocation5 + $0x3d0] sm:$0xff]
        %v488 = vld [vmem:[#allocation5 + $0x3d8] sm:$0xff]
        %v489 = vld [vmem:[#allocation5 + $0x3e0] sm:$0xff]
        %v490 = vld [vmem:[#allocation5 + $0x3e8] sm:$0xff]
        %v491 = vld [vmem:[#allocation5 + $0x3f0] sm:$0xff]
        %v492 = vld [vmem:[#allocation5 + $0x3f8] sm:$0xff]
        %v493 = vld [vmem:[%s2] sm:$0xf]
        %v495 = vlaneseq
        %v496 = vshrl.u32 %v495, 7
        %v497 = vsub.s32 0, %v496
        %v498 = vrot.slane %v493, %v497
        %v499 = vlaneseq
        %v500 = vshrl.u32 %v499, 7
        %v501 = vsub.s32 1, %v500
        %v502 = vrot.slane %v493, %v501
        %v503 = vlaneseq
        %v504 = vshrl.u32 %v503, 7
        %v505 = vsub.s32 2, %v504
        %v506 = vrot.slane %v493, %v505
        %v507 = vlaneseq
        %v508 = vshrl.u32 %v507, 7
        %v509 = vsub.s32 3, %v508
        %v510 = vrot.slane %v493, %v509
        %v519 = vunpack.c.l.b16 %v361
        %v520 = vunpack.c.h.b16 %v361
        %v521 = vunpack.c.l.b16 %v362
        %v522 = vunpack.c.h.b16 %v362
        %v523 = vunpack.c.l.b16 %v363
        %v524 = vunpack.c.h.b16 %v363
        %v525 = vunpack.c.l.b16 %v364
        %v526 = vunpack.c.h.b16 %v364
        %v527 = vpack.c.b16 %v523, %v519
        %v528 = vpack.c.b16 %v524, %v520
        %v529 = vpack.c.b16 %v525, %v521
        %v530 = vpack.c.b16 %v526, %v522
        %v663 = vunpack.c.l.b16 %v365
        %v664 = vunpack.c.h.b16 %v365
        %v665 = vunpack.c.l.b16 %v366
        %v666 = vunpack.c.h.b16 %v366
        %v667 = vunpack.c.l.b16 %v367
        %v668 = vunpack.c.h.b16 %v367
        %v669 = vunpack.c.l.b16 %v368
        %v670 = vunpack.c.h.b16 %v368
        %v671 = vunpack.c.l.b16 %v369
        %v672 = vunpack.c.h.b16 %v369
        %v673 = vunpack.c.l.b16 %v370
        %v674 = vunpack.c.h.b16 %v370
        %v675 = vunpack.c.l.b16 %v371
        %v676 = vunpack.c.h.b16 %v371
        %v677 = vunpack.c.l.b16 %v372
        %v678 = vunpack.c.h.b16 %v372
        %v679 = vunpack.c.l.b16 %v373
        %v680 = vunpack.c.h.b16 %v373
        %v681 = vunpack.c.l.b16 %v374
        %v682 = vunpack.c.h.b16 %v374
        %v683 = vunpack.c.l.b16 %v375
        %v684 = vunpack.c.h.b16 %v375
        %v685 = vunpack.c.l.b16 %v376
        %v686 = vunpack.c.h.b16 %v376
        %v687 = vunpack.c.l.b16 %v377
        %v688 = vunpack.c.h.b16 %v377
        %v689 = vunpack.c.l.b16 %v378
        %v690 = vunpack.c.h.b16 %v378
        %v691 = vunpack.c.l.b16 %v379
        %v692 = vunpack.c.h.b16 %v379
        %v693 = vunpack.c.l.b16 %v380
        %v694 = vunpack.c.h.b16 %v380
        %v695 = vunpack.c.l.b16 %v381
        %v696 = vunpack.c.h.b16 %v381
        %v697 = vunpack.c.l.b16 %v382
        %v698 = vunpack.c.h.b16 %v382
        %v699 = vunpack.c.l.b16 %v383
        %v700 = vunpack.c.h.b16 %v383
        %v701 = vunpack.c.l.b16 %v384
        %v702 = vunpack.c.h.b16 %v384
        %v703 = vunpack.c.l.b16 %v385
        %v704 = vunpack.c.h.b16 %v385
        %v705 = vunpack.c.l.b16 %v386
        %v706 = vunpack.c.h.b16 %v386
        %v707 = vunpack.c.l.b16 %v387
        %v708 = vunpack.c.h.b16 %v387
        %v709 = vunpack.c.l.b16 %v388
        %v710 = vunpack.c.h.b16 %v388
        %v711 = vunpack.c.l.b16 %v389
        %v712 = vunpack.c.h.b16 %v389
        %v713 = vunpack.c.l.b16 %v390
        %v714 = vunpack.c.h.b16 %v390
        %v715 = vunpack.c.l.b16 %v391
        %v716 = vunpack.c.h.b16 %v391
        %v717 = vunpack.c.l.b16 %v392
        %v718 = vunpack.c.h.b16 %v392
        %v719 = vunpack.c.l.b16 %v393
        %v720 = vunpack.c.h.b16 %v393
        %v721 = vunpack.c.l.b16 %v394
        %v722 = vunpack.c.h.b16 %v394
        %v723 = vunpack.c.l.b16 %v395
        %v724 = vunpack.c.h.b16 %v395
        %v725 = vunpack.c.l.b16 %v396
        %v726 = vunpack.c.h.b16 %v396
        %v727 = vunpack.c.l.b16 %v397
        %v728 = vunpack.c.h.b16 %v397
        %v729 = vunpack.c.l.b16 %v398
        %v730 = vunpack.c.h.b16 %v398
        %v731 = vunpack.c.l.b16 %v399
        %v732 = vunpack.c.h.b16 %v399
        %v733 = vunpack.c.l.b16 %v400
        %v734 = vunpack.c.h.b16 %v400
        %v735 = vunpack.c.l.b16 %v401
        %v736 = vunpack.c.h.b16 %v401
        %v737 = vunpack.c.l.b16 %v402
        %v738 = vunpack.c.h.b16 %v402
        %v739 = vunpack.c.l.b16 %v403
        %v740 = vunpack.c.h.b16 %v403
        %v741 = vunpack.c.l.b16 %v404
        %v742 = vunpack.c.h.b16 %v404
        %v743 = vunpack.c.l.b16 %v405
        %v744 = vunpack.c.h.b16 %v405
        %v745 = vunpack.c.l.b16 %v406
        %v746 = vunpack.c.h.b16 %v406
        %v747 = vunpack.c.l.b16 %v407
        %v748 = vunpack.c.h.b16 %v407
        %v749 = vunpack.c.l.b16 %v408
        %v750 = vunpack.c.h.b16 %v408
        %v751 = vunpack.c.l.b16 %v409
        %v752 = vunpack.c.h.b16 %v409
        %v753 = vunpack.c.l.b16 %v410
        %v754 = vunpack.c.h.b16 %v410
        %v755 = vunpack.c.l.b16 %v411
        %v756 = vunpack.c.h.b16 %v411
        %v757 = vunpack.c.l.b16 %v412
        %v758 = vunpack.c.h.b16 %v412
        %v759 = vunpack.c.l.b16 %v413
        %v760 = vunpack.c.h.b16 %v413
        %v761 = vunpack.c.l.b16 %v414
        %v762 = vunpack.c.h.b16 %v414
        %v763 = vunpack.c.l.b16 %v415
        %v764 = vunpack.c.h.b16 %v415
        %v765 = vunpack.c.l.b16 %v416
        %v766 = vunpack.c.h.b16 %v416
        %v767 = vunpack.c.l.b16 %v417
        %v768 = vunpack.c.h.b16 %v417
        %v769 = vunpack.c.l.b16 %v418
        %v770 = vunpack.c.h.b16 %v418
        %v771 = vunpack.c.l.b16 %v419
        %v772 = vunpack.c.h.b16 %v419
        %v773 = vunpack.c.l.b16 %v420
        %v774 = vunpack.c.h.b16 %v420
        %v775 = vunpack.c.l.b16 %v421
        %v776 = vunpack.c.h.b16 %v421
        %v777 = vunpack.c.l.b16 %v422
        %v778 = vunpack.c.h.b16 %v422
        %v779 = vunpack.c.l.b16 %v423
        %v780 = vunpack.c.h.b16 %v423
        %v781 = vunpack.c.l.b16 %v424
        %v782 = vunpack.c.h.b16 %v424
        %v783 = vunpack.c.l.b16 %v425
        %v784 = vunpack.c.h.b16 %v425
        %v785 = vunpack.c.l.b16 %v426
        %v786 = vunpack.c.h.b16 %v426
        %v787 = vunpack.c.l.b16 %v427
        %v788 = vunpack.c.h.b16 %v427
        %v789 = vunpack.c.l.b16 %v428
        %v790 = vunpack.c.h.b16 %v428
        %v791 = vunpack.c.l.b16 %v429
        %v792 = vunpack.c.h.b16 %v429
        %v793 = vunpack.c.l.b16 %v430
        %v794 = vunpack.c.h.b16 %v430
        %v795 = vunpack.c.l.b16 %v431
        %v796 = vunpack.c.h.b16 %v431
        %v797 = vunpack.c.l.b16 %v432
        %v798 = vunpack.c.h.b16 %v432
        %v799 = vunpack.c.l.b16 %v433
        %v800 = vunpack.c.h.b16 %v433
        %v801 = vunpack.c.l.b16 %v434
        %v802 = vunpack.c.h.b16 %v434
        %v803 = vunpack.c.l.b16 %v435
        %v804 = vunpack.c.h.b16 %v435
        %v805 = vunpack.c.l.b16 %v436
        %v806 = vunpack.c.h.b16 %v436
        %v807 = vunpack.c.l.b16 %v437
        %v808 = vunpack.c.h.b16 %v437
        %v809 = vunpack.c.l.b16 %v438
        %v810 = vunpack.c.h.b16 %v438
        %v811 = vunpack.c.l.b16 %v439
        %v812 = vunpack.c.h.b16 %v439
        %v813 = vunpack.c.l.b16 %v440
        %v814 = vunpack.c.h.b16 %v440
        %v815 = vunpack.c.l.b16 %v441
        %v816 = vunpack.c.h.b16 %v441
        %v817 = vunpack.c.l.b16 %v442
        %v818 = vunpack.c.h.b16 %v442
        %v819 = vunpack.c.l.b16 %v443
        %v820 = vunpack.c.h.b16 %v443
        %v821 = vunpack.c.l.b16 %v444
        %v822 = vunpack.c.h.b16 %v444
        %v823 = vunpack.c.l.b16 %v445
        %v824 = vunpack.c.h.b16 %v445
        %v825 = vunpack.c.l.b16 %v446
        %v826 = vunpack.c.h.b16 %v446
        %v827 = vunpack.c.l.b16 %v447
        %v828 = vunpack.c.h.b16 %v447
        %v829 = vunpack.c.l.b16 %v448
        %v830 = vunpack.c.h.b16 %v448
        %v831 = vunpack.c.l.b16 %v449
        %v832 = vunpack.c.h.b16 %v449
        %v833 = vunpack.c.l.b16 %v450
        %v834 = vunpack.c.h.b16 %v450
        %v835 = vunpack.c.l.b16 %v451
        %v836 = vunpack.c.h.b16 %v451
        %v837 = vunpack.c.l.b16 %v452
        %v838 = vunpack.c.h.b16 %v452
        %v839 = vunpack.c.l.b16 %v453
        %v840 = vunpack.c.h.b16 %v453
        %v841 = vunpack.c.l.b16 %v454
        %v842 = vunpack.c.h.b16 %v454
        %v843 = vunpack.c.l.b16 %v455
        %v844 = vunpack.c.h.b16 %v455
        %v845 = vunpack.c.l.b16 %v456
        %v846 = vunpack.c.h.b16 %v456
        %v847 = vunpack.c.l.b16 %v457
        %v848 = vunpack.c.h.b16 %v457
        %v849 = vunpack.c.l.b16 %v458
        %v850 = vunpack.c.h.b16 %v458
        %v851 = vunpack.c.l.b16 %v459
        %v852 = vunpack.c.h.b16 %v459
        %v853 = vunpack.c.l.b16 %v460
        %v854 = vunpack.c.h.b16 %v460
        %v855 = vunpack.c.l.b16 %v461
        %v856 = vunpack.c.h.b16 %v461
        %v857 = vunpack.c.l.b16 %v462
        %v858 = vunpack.c.h.b16 %v462
        %v859 = vunpack.c.l.b16 %v463
        %v860 = vunpack.c.h.b16 %v463
        %v861 = vunpack.c.l.b16 %v464
        %v862 = vunpack.c.h.b16 %v464
        %v863 = vunpack.c.l.b16 %v465
        %v864 = vunpack.c.h.b16 %v465
        %v865 = vunpack.c.l.b16 %v466
        %v866 = vunpack.c.h.b16 %v466
        %v867 = vunpack.c.l.b16 %v467
        %v868 = vunpack.c.h.b16 %v467
        %v869 = vunpack.c.l.b16 %v468
        %v870 = vunpack.c.h.b16 %v468
        %v871 = vunpack.c.l.b16 %v469
        %v872 = vunpack.c.h.b16 %v469
        %v873 = vunpack.c.l.b16 %v470
        %v874 = vunpack.c.h.b16 %v470
        %v875 = vunpack.c.l.b16 %v471
        %v876 = vunpack.c.h.b16 %v471
        %v877 = vunpack.c.l.b16 %v472
        %v878 = vunpack.c.h.b16 %v472
        %v879 = vunpack.c.l.b16 %v473
        %v880 = vunpack.c.h.b16 %v473
        %v881 = vunpack.c.l.b16 %v474
        %v882 = vunpack.c.h.b16 %v474
        %v883 = vunpack.c.l.b16 %v475
        %v884 = vunpack.c.h.b16 %v475
        %v885 = vunpack.c.l.b16 %v476
        %v886 = vunpack.c.h.b16 %v476
        %v887 = vunpack.c.l.b16 %v477
        %v888 = vunpack.c.h.b16 %v477
        %v889 = vunpack.c.l.b16 %v478
        %v890 = vunpack.c.h.b16 %v478
        %v891 = vunpack.c.l.b16 %v479
        %v892 = vunpack.c.h.b16 %v479
        %v893 = vunpack.c.l.b16 %v480
        %v894 = vunpack.c.h.b16 %v480
        %v895 = vunpack.c.l.b16 %v481
        %v896 = vunpack.c.h.b16 %v481
        %v897 = vunpack.c.l.b16 %v482
        %v898 = vunpack.c.h.b16 %v482
        %v899 = vunpack.c.l.b16 %v483
        %v900 = vunpack.c.h.b16 %v483
        %v901 = vunpack.c.l.b16 %v484
        %v902 = vunpack.c.h.b16 %v484
        %v903 = vunpack.c.l.b16 %v485
        %v904 = vunpack.c.h.b16 %v485
        %v905 = vunpack.c.l.b16 %v486
        %v906 = vunpack.c.h.b16 %v486
        %v907 = vunpack.c.l.b16 %v487
        %v908 = vunpack.c.h.b16 %v487
        %v909 = vunpack.c.l.b16 %v488
        %v910 = vunpack.c.h.b16 %v488
        %v911 = vunpack.c.l.b16 %v489
        %v912 = vunpack.c.h.b16 %v489
        %v913 = vunpack.c.l.b16 %v490
        %v914 = vunpack.c.h.b16 %v490
        %v915 = vunpack.c.l.b16 %v491
        %v916 = vunpack.c.h.b16 %v491
        %v917 = vunpack.c.l.b16 %v492
        %v918 = vunpack.c.h.b16 %v492
        %v919 = vpack.c.b16 %v667, %v663
        %v920 = vpack.c.b16 %v668, %v664
        %v921 = vpack.c.b16 %v669, %v665
        %v922 = vpack.c.b16 %v670, %v666
        %v923 = vpack.c.b16 %v675, %v671
        %v924 = vpack.c.b16 %v676, %v672
        %v925 = vpack.c.b16 %v677, %v673
        %v926 = vpack.c.b16 %v678, %v674
        %v927 = vpack.c.b16 %v683, %v679
        %v928 = vpack.c.b16 %v684, %v680
        %v929 = vpack.c.b16 %v685, %v681
        %v930 = vpack.c.b16 %v686, %v682
        %v931 = vpack.c.b16 %v691, %v687
        %v932 = vpack.c.b16 %v692, %v688
        %v933 = vpack.c.b16 %v693, %v689
        %v934 = vpack.c.b16 %v694, %v690
        %v935 = vpack.c.b16 %v699, %v695
        %v936 = vpack.c.b16 %v700, %v696
        %v937 = vpack.c.b16 %v701, %v697
        %v938 = vpack.c.b16 %v702, %v698
        %v939 = vpack.c.b16 %v707, %v703
        %v940 = vpack.c.b16 %v708, %v704
        %v941 = vpack.c.b16 %v709, %v705
        %v942 = vpack.c.b16 %v710, %v706
        %v943 = vpack.c.b16 %v715, %v711
        %v944 = vpack.c.b16 %v716, %v712
        %v945 = vpack.c.b16 %v717, %v713
        %v946 = vpack.c.b16 %v718, %v714
        %v947 = vpack.c.b16 %v723, %v719
        %v948 = vpack.c.b16 %v724, %v720
        %v949 = vpack.c.b16 %v725, %v721
        %v950 = vpack.c.b16 %v726, %v722
        %v951 = vpack.c.b16 %v731, %v727
        %v952 = vpack.c.b16 %v732, %v728
        %v953 = vpack.c.b16 %v733, %v729
        %v954 = vpack.c.b16 %v734, %v730
        %v955 = vpack.c.b16 %v739, %v735
        %v956 = vpack.c.b16 %v740, %v736
        %v957 = vpack.c.b16 %v741, %v737
        %v958 = vpack.c.b16 %v742, %v738
        %v959 = vpack.c.b16 %v747, %v743
        %v960 = vpack.c.b16 %v748, %v744
        %v961 = vpack.c.b16 %v749, %v745
        %v962 = vpack.c.b16 %v750, %v746
        %v963 = vpack.c.b16 %v755, %v751
        %v964 = vpack.c.b16 %v756, %v752
        %v965 = vpack.c.b16 %v757, %v753
        %v966 = vpack.c.b16 %v758, %v754
        %v967 = vpack.c.b16 %v763, %v759
        %v968 = vpack.c.b16 %v764, %v760
        %v969 = vpack.c.b16 %v765, %v761
        %v970 = vpack.c.b16 %v766, %v762
        %v971 = vpack.c.b16 %v771, %v767
        %v972 = vpack.c.b16 %v772, %v768
        %v973 = vpack.c.b16 %v773, %v769
        %v974 = vpack.c.b16 %v774, %v770
        %v975 = vpack.c.b16 %v779, %v775
        %v976 = vpack.c.b16 %v780, %v776
        %v977 = vpack.c.b16 %v781, %v777
        %v978 = vpack.c.b16 %v782, %v778
        %v979 = vpack.c.b16 %v787, %v783
        %v980 = vpack.c.b16 %v788, %v784
        %v981 = vpack.c.b16 %v789, %v785
        %v982 = vpack.c.b16 %v790, %v786
        %v983 = vpack.c.b16 %v795, %v791
        %v984 = vpack.c.b16 %v796, %v792
        %v985 = vpack.c.b16 %v797, %v793
        %v986 = vpack.c.b16 %v798, %v794
        %v987 = vpack.c.b16 %v803, %v799
        %v988 = vpack.c.b16 %v804, %v800
        %v989 = vpack.c.b16 %v805, %v801
        %v990 = vpack.c.b16 %v806, %v802
        %v991 = vpack.c.b16 %v811, %v807
        %v992 = vpack.c.b16 %v812, %v808
        %v993 = vpack.c.b16 %v813, %v809
        %v994 = vpack.c.b16 %v814, %v810
        %v995 = vpack.c.b16 %v819, %v815
        %v996 = vpack.c.b16 %v820, %v816
        %v997 = vpack.c.b16 %v821, %v817
        %v998 = vpack.c.b16 %v822, %v818
        %v999 = vpack.c.b16 %v827, %v823
        %v1000 = vpack.c.b16 %v828, %v824
        %v1001 = vpack.c.b16 %v829, %v825
        %v1002 = vpack.c.b16 %v830, %v826
        %v1003 = vpack.c.b16 %v835, %v831
        %v1004 = vpack.c.b16 %v836, %v832
        %v1005 = vpack.c.b16 %v837, %v833
        %v1006 = vpack.c.b16 %v838, %v834
        %v1007 = vpack.c.b16 %v843, %v839
        %v1008 = vpack.c.b16 %v844, %v840
        %v1009 = vpack.c.b16 %v845, %v841
        %v1010 = vpack.c.b16 %v846, %v842
        %v1011 = vpack.c.b16 %v851, %v847
        %v1012 = vpack.c.b16 %v852, %v848
        %v1013 = vpack.c.b16 %v853, %v849
        %v1014 = vpack.c.b16 %v854, %v850
        %v1015 = vpack.c.b16 %v859, %v855
        %v1016 = vpack.c.b16 %v860, %v856
        %v1017 = vpack.c.b16 %v861, %v857
        %v1018 = vpack.c.b16 %v862, %v858
        %v1019 = vpack.c.b16 %v867, %v863
        %v1020 = vpack.c.b16 %v868, %v864
        %v1021 = vpack.c.b16 %v869, %v865
        %v1022 = vpack.c.b16 %v870, %v866
        %v1023 = vpack.c.b16 %v875, %v871
        %v1024 = vpack.c.b16 %v876, %v872
        %v1025 = vpack.c.b16 %v877, %v873
        %v1026 = vpack.c.b16 %v878, %v874
        %v1027 = vpack.c.b16 %v883, %v879
        %v1028 = vpack.c.b16 %v884, %v880
        %v1029 = vpack.c.b16 %v885, %v881
        %v1030 = vpack.c.b16 %v886, %v882
        %v1031 = vpack.c.b16 %v891, %v887
        %v1032 = vpack.c.b16 %v892, %v888
        %v1033 = vpack.c.b16 %v893, %v889
        %v1034 = vpack.c.b16 %v894, %v890
        %v1035 = vpack.c.b16 %v899, %v895
        %v1036 = vpack.c.b16 %v900, %v896
        %v1037 = vpack.c.b16 %v901, %v897
        %v1038 = vpack.c.b16 %v902, %v898
        %v1039 = vpack.c.b16 %v907, %v903
        %v1040 = vpack.c.b16 %v908, %v904
        %v1041 = vpack.c.b16 %v909, %v905
        %v1042 = vpack.c.b16 %v910, %v906
        %v1043 = vpack.c.b16 %v915, %v911
        %v1044 = vpack.c.b16 %v916, %v912
        %v1045 = vpack.c.b16 %v917, %v913
        %v1046 = vpack.c.b16 %v918, %v914
        %1175 = vmatprep.subr.bf16.mxu0 %v920
        %1176 = vmatpush1.bf16.msra.mxu0 %v919
        %1177 = vmatprep.subr.bf16.mxu0 %v924
        %1178 = vmatpush1.bf16.msra.mxu0 %v923
        %1179 = vmatprep.subr.bf16.mxu0 %v928
        %1180 = vmatpush1.bf16.msra.mxu0 %v927
        %1181 = vmatprep.subr.bf16.mxu0 %v932
        %1182 = vmatpush1.bf16.msra.mxu0 %v931
        %1183 = vmatprep.subr.bf16.mxu0 %v936
        %1184 = vmatpush1.bf16.msra.mxu0 %v935
        %1185 = vmatprep.subr.bf16.mxu0 %v940
        %1186 = vmatpush1.bf16.msra.mxu0 %v939
        %1187 = vmatprep.subr.bf16.mxu0 %v944
        %1188 = vmatpush1.bf16.msra.mxu0 %v943
        %1189 = vmatprep.subr.bf16.mxu0 %v948
        %1190 = vmatpush1.bf16.msra.mxu0 %v947
        %1191 = vmatprep.subr.bf16.mxu0 %v952
        %1192 = vmatpush1.bf16.msra.mxu0 %v951
        %1193 = vmatprep.subr.bf16.mxu0 %v956
        %1194 = vmatpush1.bf16.msra.mxu0 %v955
        %1195 = vmatprep.subr.bf16.mxu0 %v960
        %1196 = vmatpush1.bf16.msra.mxu0 %v959
        %1197 = vmatprep.subr.bf16.mxu0 %v964
        %1198 = vmatpush1.bf16.msra.mxu0 %v963
        %1199 = vmatprep.subr.bf16.mxu0 %v968
        %1200 = vmatpush1.bf16.msra.mxu0 %v967
        %1201 = vmatprep.subr.bf16.mxu0 %v972
        %1202 = vmatpush1.bf16.msra.mxu0 %v971
        %1203 = vmatprep.subr.bf16.mxu0 %v976
        %1204 = vmatpush1.bf16.msra.mxu0 %v975
        %1205 = vmatprep.subr.bf16.mxu0 %v980
        %1206 = vmatpush1.bf16.msra.mxu0 %v979
        %1207 = vmatprep.mubr.bf16.mxu0 %v528
        %1208 = vmatmul.mubr.bf16.gmra.mrb[0].mxu0 %v527
        %v1209 = vpop.f32.mrb[0].mxu0
        %v1210 = vadd.f32 %v498, %v1209
        %v1211 = vpop.f32.mrb[0].mxu0
        %v1212 = vadd.f32 %v502, %v1211
        %v1213 = vpop.f32.mrb[0].mxu0
        %v1214 = vadd.f32 %v498, %v1213
        %v1215 = vpop.f32.mrb[0].mxu0
        %v1216 = vadd.f32 %v502, %v1215
        %1217 = vdwg.mxu0
        %1218 = vmatprep.subr.bf16.mxu0 %v984
        %1219 = vmatpush1.bf16.msra.mxu0 %v983
        %1220 = vmatprep.subr.bf16.mxu0 %v988
        %1221 = vmatpush1.bf16.msra.mxu0 %v987
        %1222 = vmatprep.subr.bf16.mxu0 %v992
        %1223 = vmatpush1.bf16.msra.mxu0 %v991
        %1224 = vmatprep.subr.bf16.mxu0 %v996
        %1225 = vmatpush1.bf16.msra.mxu0 %v995
        %1226 = vmatprep.subr.bf16.mxu0 %v1000
        %1227 = vmatpush1.bf16.msra.mxu0 %v999
        %1228 = vmatprep.subr.bf16.mxu0 %v1004
        %1229 = vmatpush1.bf16.msra.mxu0 %v1003
        %1230 = vmatprep.subr.bf16.mxu0 %v1008
        %1231 = vmatpush1.bf16.msra.mxu0 %v1007
        %1232 = vmatprep.subr.bf16.mxu0 %v1012
        %1233 = vmatpush1.bf16.msra.mxu0 %v1011
        %1234 = vmatprep.subr.bf16.mxu0 %v1016
        %1235 = vmatpush1.bf16.msra.mxu0 %v1015
        %1236 = vmatprep.subr.bf16.mxu0 %v1020
        %1237 = vmatpush1.bf16.msra.mxu0 %v1019
        %1238 = vmatprep.subr.bf16.mxu0 %v1024
        %1239 = vmatpush1.bf16.msra.mxu0 %v1023
        %1240 = vmatprep.subr.bf16.mxu0 %v1028
        %1241 = vmatpush1.bf16.msra.mxu0 %v1027
        %1242 = vmatprep.subr.bf16.mxu0 %v1032
        %1243 = vmatpush1.bf16.msra.mxu0 %v1031
        %1244 = vmatprep.subr.bf16.mxu0 %v1036
        %1245 = vmatpush1.bf16.msra.mxu0 %v1035
        %1246 = vmatprep.subr.bf16.mxu0 %v1040
        %1247 = vmatpush1.bf16.msra.mxu0 %v1039
        %1248 = vmatprep.subr.bf16.mxu0 %v1044
        %1249 = vmatpush1.bf16.msra.mxu0 %v1043
        %1250 = vmatprep.mubr.bf16.mxu0 %v530
        %1251 = vmatmul.mubr.bf16.gmra.mrb[0].mxu0 %v529
        %v1252 = vpop.f32.mrb[0].mxu0
        %v1253 = vadd.f32 %v1210, %v1252
        %v1254 = vpop.f32.mrb[0].mxu0
        %v1255 = vadd.f32 %v1212, %v1254
        %v1256 = vpop.f32.mrb[0].mxu0
        %v1257 = vadd.f32 %v1214, %v1256
        %v1258 = vpop.f32.mrb[0].mxu0
        %v1259 = vadd.f32 %v1216, %v1258
        %1260 = vdwg.mxu0
        %1261 = vmatprep.subr.bf16.mxu0 %v922
        %1262 = vmatpush1.bf16.msra.mxu0 %v921
        %1263 = vmatprep.subr.bf16.mxu0 %v926
        %1264 = vmatpush1.bf16.msra.mxu0 %v925
        %1265 = vmatprep.subr.bf16.mxu0 %v930
        %1266 = vmatpush1.bf16.msra.mxu0 %v929
        %1267 = vmatprep.subr.bf16.mxu0 %v934
        %1268 = vmatpush1.bf16.msra.mxu0 %v933
        %1269 = vmatprep.subr.bf16.mxu0 %v938
        %1270 = vmatpush1.bf16.msra.mxu0 %v937
        %1271 = vmatprep.subr.bf16.mxu0 %v942
        %1272 = vmatpush1.bf16.msra.mxu0 %v941
        %1273 = vmatprep.subr.bf16.mxu0 %v946
        %1274 = vmatpush1.bf16.msra.mxu0 %v945
        %1275 = vmatprep.subr.bf16.mxu0 %v950
        %1276 = vmatpush1.bf16.msra.mxu0 %v949
        %1277 = vmatprep.subr.bf16.mxu0 %v954
        %1278 = vmatpush1.bf16.msra.mxu0 %v953
        %1279 = vmatprep.subr.bf16.mxu0 %v958
        %1280 = vmatpush1.bf16.msra.mxu0 %v957
        %1281 = vmatprep.subr.bf16.mxu0 %v962
        %1282 = vmatpush1.bf16.msra.mxu0 %v961
        %1283 = vmatprep.subr.bf16.mxu0 %v966
        %1284 = vmatpush1.bf16.msra.mxu0 %v965
        %1285 = vmatprep.subr.bf16.mxu0 %v970
        %1286 = vmatpush1.bf16.msra.mxu0 %v969
        %1287 = vmatprep.subr.bf16.mxu0 %v974
        %1288 = vmatpush1.bf16.msra.mxu0 %v973
        %1289 = vmatprep.subr.bf16.mxu0 %v978
        %1290 = vmatpush1.bf16.msra.mxu0 %v977
        %1291 = vmatprep.subr.bf16.mxu0 %v982
        %1292 = vmatpush1.bf16.msra.mxu0 %v981
        %1293 = vmatprep.mubr.bf16.mxu0 %v528
        %1294 = vmatmul.mubr.bf16.gmra.mrb[0].mxu0 %v527
        %v1295 = vpop.f32.mrb[0].mxu0
        %v1296 = vadd.f32 %v506, %v1295
        %v1297 = vpop.f32.mrb[0].mxu0
        %v1298 = vadd.f32 %v510, %v1297
        %v1299 = vpop.f32.mrb[0].mxu0
        %v1300 = vadd.f32 %v506, %v1299
        %v1301 = vpop.f32.mrb[0].mxu0
        %v1302 = vadd.f32 %v510, %v1301
        %1303 = vdwg.mxu0
        %1304 = vmatprep.subr.bf16.mxu0 %v986
        %1305 = vmatpush1.bf16.msra.mxu0 %v985
        %1306 = vmatprep.subr.bf16.mxu0 %v990
        %1307 = vmatpush1.bf16.msra.mxu0 %v989
        %1308 = vmatprep.subr.bf16.mxu0 %v994
        %1309 = vmatpush1.bf16.msra.mxu0 %v993
        %1310 = vmatprep.subr.bf16.mxu0 %v998
        %1311 = vmatpush1.bf16.msra.mxu0 %v997
        %1312 = vmatprep.subr.bf16.mxu0 %v1002
        %1313 = vmatpush1.bf16.msra.mxu0 %v1001
        %1314 = vmatprep.subr.bf16.mxu0 %v1006
        %1315 = vmatpush1.bf16.msra.mxu0 %v1005
        %1316 = vmatprep.subr.bf16.mxu0 %v1010
        %1317 = vmatpush1.bf16.msra.mxu0 %v1009
        %1318 = vmatprep.subr.bf16.mxu0 %v1014
        %1319 = vmatpush1.bf16.msra.mxu0 %v1013
        %1320 = vmatprep.subr.bf16.mxu0 %v1018
        %1321 = vmatpush1.bf16.msra.mxu0 %v1017
        %1322 = vmatprep.subr.bf16.mxu0 %v1022
        %1323 = vmatpush1.bf16.msra.mxu0 %v1021
        %1324 = vmatprep.subr.bf16.mxu0 %v1026
        %1325 = vmatpush1.bf16.msra.mxu0 %v1025
        %1326 = vmatprep.subr.bf16.mxu0 %v1030
        %1327 = vmatpush1.bf16.msra.mxu0 %v1029
        %1328 = vmatprep.subr.bf16.mxu0 %v1034
        %1329 = vmatpush1.bf16.msra.mxu0 %v1033
        %1330 = vmatprep.subr.bf16.mxu0 %v1038
        %1331 = vmatpush1.bf16.msra.mxu0 %v1037
        %1332 = vmatprep.subr.bf16.mxu0 %v1042
        %1333 = vmatpush1.bf16.msra.mxu0 %v1041
        %1334 = vmatprep.subr.bf16.mxu0 %v1046
        %1335 = vmatpush1.bf16.msra.mxu0 %v1045
        %1336 = vmatprep.mubr.bf16.mxu0 %v530
        %1337 = vmatmul.mubr.bf16.gmra.mrb[0].mxu0 %v529
        %v1338 = vpop.f32.mrb[0].mxu0
        %v1339 = vadd.f32 %v1296, %v1338
        %v1340 = vpop.f32.mrb[0].mxu0
        %v1341 = vadd.f32 %v1298, %v1340
        %v1342 = vpop.f32.mrb[0].mxu0
        %v1343 = vadd.f32 %v1300, %v1342
        %v1344 = vpop.f32.mrb[0].mxu0
        %v1345 = vadd.f32 %v1302, %v1344
        %1346 = vdwg.mxu0
        %v1347 = vmax.f32 %v1253, 0.0
        %v1348 = vmax.f32 %v1255, 0.0
        %v1349 = vmax.f32 %v1339, 0.0
        %v1350 = vmax.f32 %v1341, 0.0
        %v1351 = vmax.f32 %v1257, 0.0
        %v1352 = vmax.f32 %v1259, 0.0
        %v1353 = vmax.f32 %v1343, 0.0
        %v1354 = vmax.f32 %v1345, 0.0
        %v1355 = vpack.c.bf16 %v1351, %v1347
        %v1356 = vpack.c.bf16 %v1352, %v1348
        %v1357 = vpack.c.bf16 %v1353, %v1349
        %v1358 = vpack.c.bf16 %v1354, %v1350
        %v1359 = vld [vmem:[#allocation7] sm:$0xff]
        %v1360 = vld [vmem:[#allocation7 + $0x8] sm:$0xff]
        %v1361 = vld [vmem:[#allocation7 + $0x10] sm:$0xff]
        %v1362 = vld [vmem:[#allocation7 + $0x18] sm:$0xff]
        %v1363 = vld [vmem:[#allocation7 + $0x20] sm:$0xff]
        %v1364 = vld [vmem:[#allocation7 + $0x28] sm:$0xff]
        %v1365 = vld [vmem:[#allocation7 + $0x30] sm:$0xff]
        %v1366 = vld [vmem:[#allocation7 + $0x38] sm:$0xff]
        %v1367 = vld [vmem:[#allocation7 + $0x40] sm:$0xff]
        %v1368 = vld [vmem:[#allocation7 + $0x48] sm:$0xff]
        %v1369 = vld [vmem:[#allocation7 + $0x50] sm:$0xff]
        %v1370 = vld [vmem:[#allocation7 + $0x58] sm:$0xff]
        %v1371 = vld [vmem:[#allocation7 + $0x60] sm:$0xff]
        %v1372 = vld [vmem:[#allocation7 + $0x68] sm:$0xff]
        %v1373 = vld [vmem:[#allocation7 + $0x70] sm:$0xff]
        %v1374 = vld [vmem:[#allocation7 + $0x78] sm:$0xff]
        %v1375 = vld [vmem:[#allocation7 + $0x80] sm:$0xff]
        %v1376 = vld [vmem:[#allocation7 + $0x88] sm:$0xff]
        %v1377 = vld [vmem:[#allocation7 + $0x90] sm:$0xff]
        %v1378 = vld [vmem:[#allocation7 + $0x98] sm:$0xff]
        %v1379 = vld [vmem:[#allocation7 + $0xa0] sm:$0xff]
        %v1380 = vld [vmem:[#allocation7 + $0xa8] sm:$0xff]
        %v1381 = vld [vmem:[#allocation7 + $0xb0] sm:$0xff]
        %v1382 = vld [vmem:[#allocation7 + $0xb8] sm:$0xff]
        %v1383 = vld [vmem:[#allocation7 + $0xc0] sm:$0xff]
        %v1384 = vld [vmem:[#allocation7 + $0xc8] sm:$0xff]
        %v1385 = vld [vmem:[#allocation7 + $0xd0] sm:$0xff]
        %v1386 = vld [vmem:[#allocation7 + $0xd8] sm:$0xff]
        %v1387 = vld [vmem:[#allocation7 + $0xe0] sm:$0xff]
        %v1388 = vld [vmem:[#allocation7 + $0xe8] sm:$0xff]
        %v1389 = vld [vmem:[#allocation7 + $0xf0] sm:$0xff]
        %v1390 = vld [vmem:[#allocation7 + $0xf8] sm:$0xff]
        %v1391 = vld [vmem:[#allocation7 + $0x100] sm:$0xff]
        %v1392 = vld [vmem:[#allocation7 + $0x108] sm:$0xff]
        %v1393 = vld [vmem:[#allocation7 + $0x110] sm:$0xff]
        %v1394 = vld [vmem:[#allocation7 + $0x118] sm:$0xff]
        %v1395 = vld [vmem:[#allocation7 + $0x120] sm:$0xff]
        %v1396 = vld [vmem:[#allocation7 + $0x128] sm:$0xff]
        %v1397 = vld [vmem:[#allocation7 + $0x130] sm:$0xff]
        %v1398 = vld [vmem:[#allocation7 + $0x138] sm:$0xff]
        %v1399 = vld [vmem:[#allocation7 + $0x140] sm:$0xff]
        %v1400 = vld [vmem:[#allocation7 + $0x148] sm:$0xff]
        %v1401 = vld [vmem:[#allocation7 + $0x150] sm:$0xff]
        %v1402 = vld [vmem:[#allocation7 + $0x158] sm:$0xff]
        %v1403 = vld [vmem:[#allocation7 + $0x160] sm:$0xff]
        %v1404 = vld [vmem:[#allocation7 + $0x168] sm:$0xff]
        %v1405 = vld [vmem:[#allocation7 + $0x170] sm:$0xff]
        %v1406 = vld [vmem:[#allocation7 + $0x178] sm:$0xff]
        %v1407 = vld [vmem:[#allocation7 + $0x180] sm:$0xff]
        %v1408 = vld [vmem:[#allocation7 + $0x188] sm:$0xff]
        %v1409 = vld [vmem:[#allocation7 + $0x190] sm:$0xff]
        %v1410 = vld [vmem:[#allocation7 + $0x198] sm:$0xff]
        %v1411 = vld [vmem:[#allocation7 + $0x1a0] sm:$0xff]
        %v1412 = vld [vmem:[#allocation7 + $0x1a8] sm:$0xff]
        %v1413 = vld [vmem:[#allocation7 + $0x1b0] sm:$0xff]
        %v1414 = vld [vmem:[#allocation7 + $0x1b8] sm:$0xff]
        %v1415 = vld [vmem:[#allocation7 + $0x1c0] sm:$0xff]
        %v1416 = vld [vmem:[#allocation7 + $0x1c8] sm:$0xff]
        %v1417 = vld [vmem:[#allocation7 + $0x1d0] sm:$0xff]
        %v1418 = vld [vmem:[#allocation7 + $0x1d8] sm:$0xff]
        %v1419 = vld [vmem:[#allocation7 + $0x1e0] sm:$0xff]
        %v1420 = vld [vmem:[#allocation7 + $0x1e8] sm:$0xff]
        %v1421 = vld [vmem:[#allocation7 + $0x1f0] sm:$0xff]
        %v1422 = vld [vmem:[#allocation7 + $0x1f8] sm:$0xff]
        %v1423 = vld [vmem:[#allocation7 + $0x200] sm:$0xff]
        %v1424 = vld [vmem:[#allocation7 + $0x208] sm:$0xff]
        %v1425 = vld [vmem:[#allocation7 + $0x210] sm:$0xff]
        %v1426 = vld [vmem:[#allocation7 + $0x218] sm:$0xff]
        %v1427 = vld [vmem:[#allocation7 + $0x220] sm:$0xff]
        %v1428 = vld [vmem:[#allocation7 + $0x228] sm:$0xff]
        %v1429 = vld [vmem:[#allocation7 + $0x230] sm:$0xff]
        %v1430 = vld [vmem:[#allocation7 + $0x238] sm:$0xff]
        %v1431 = vld [vmem:[#allocation7 + $0x240] sm:$0xff]
        %v1432 = vld [vmem:[#allocation7 + $0x248] sm:$0xff]
        %v1433 = vld [vmem:[#allocation7 + $0x250] sm:$0xff]
        %v1434 = vld [vmem:[#allocation7 + $0x258] sm:$0xff]
        %v1435 = vld [vmem:[#allocation7 + $0x260] sm:$0xff]
        %v1436 = vld [vmem:[#allocation7 + $0x268] sm:$0xff]
        %v1437 = vld [vmem:[#allocation7 + $0x270] sm:$0xff]
        %v1438 = vld [vmem:[#allocation7 + $0x278] sm:$0xff]
        %v1439 = vld [vmem:[#allocation7 + $0x280] sm:$0xff]
        %v1440 = vld [vmem:[#allocation7 + $0x288] sm:$0xff]
        %v1441 = vld [vmem:[#allocation7 + $0x290] sm:$0xff]
        %v1442 = vld [vmem:[#allocation7 + $0x298] sm:$0xff]
        %v1443 = vld [vmem:[#allocation7 + $0x2a0] sm:$0xff]
        %v1444 = vld [vmem:[#allocation7 + $0x2a8] sm:$0xff]
        %v1445 = vld [vmem:[#allocation7 + $0x2b0] sm:$0xff]
        %v1446 = vld [vmem:[#allocation7 + $0x2b8] sm:$0xff]
        %v1447 = vld [vmem:[#allocation7 + $0x2c0] sm:$0xff]
        %v1448 = vld [vmem:[#allocation7 + $0x2c8] sm:$0xff]
        %v1449 = vld [vmem:[#allocation7 + $0x2d0] sm:$0xff]
        %v1450 = vld [vmem:[#allocation7 + $0x2d8] sm:$0xff]
        %v1451 = vld [vmem:[#allocation7 + $0x2e0] sm:$0xff]
        %v1452 = vld [vmem:[#allocation7 + $0x2e8] sm:$0xff]
        %v1453 = vld [vmem:[#allocation7 + $0x2f0] sm:$0xff]
        %v1454 = vld [vmem:[#allocation7 + $0x2f8] sm:$0xff]
        %v1455 = vld [vmem:[#allocation7 + $0x300] sm:$0xff]
        %v1456 = vld [vmem:[#allocation7 + $0x308] sm:$0xff]
        %v1457 = vld [vmem:[#allocation7 + $0x310] sm:$0xff]
        %v1458 = vld [vmem:[#allocation7 + $0x318] sm:$0xff]
        %v1459 = vld [vmem:[#allocation7 + $0x320] sm:$0xff]
        %v1460 = vld [vmem:[#allocation7 + $0x328] sm:$0xff]
        %v1461 = vld [vmem:[#allocation7 + $0x330] sm:$0xff]
        %v1462 = vld [vmem:[#allocation7 + $0x338] sm:$0xff]
        %v1463 = vld [vmem:[#allocation7 + $0x340] sm:$0xff]
        %v1464 = vld [vmem:[#allocation7 + $0x348] sm:$0xff]
        %v1465 = vld [vmem:[#allocation7 + $0x350] sm:$0xff]
        %v1466 = vld [vmem:[#allocation7 + $0x358] sm:$0xff]
        %v1467 = vld [vmem:[#allocation7 + $0x360] sm:$0xff]
        %v1468 = vld [vmem:[#allocation7 + $0x368] sm:$0xff]
        %v1469 = vld [vmem:[#allocation7 + $0x370] sm:$0xff]
        %v1470 = vld [vmem:[#allocation7 + $0x378] sm:$0xff]
        %v1471 = vld [vmem:[#allocation7 + $0x380] sm:$0xff]
        %v1472 = vld [vmem:[#allocation7 + $0x388] sm:$0xff]
        %v1473 = vld [vmem:[#allocation7 + $0x390] sm:$0xff]
        %v1474 = vld [vmem:[#allocation7 + $0x398] sm:$0xff]
        %v1475 = vld [vmem:[#allocation7 + $0x3a0] sm:$0xff]
        %v1476 = vld [vmem:[#allocation7 + $0x3a8] sm:$0xff]
        %v1477 = vld [vmem:[#allocation7 + $0x3b0] sm:$0xff]
        %v1478 = vld [vmem:[#allocation7 + $0x3b8] sm:$0xff]
        %v1479 = vld [vmem:[#allocation7 + $0x3c0] sm:$0xff]
        %v1480 = vld [vmem:[#allocation7 + $0x3c8] sm:$0xff]
        %v1481 = vld [vmem:[#allocation7 + $0x3d0] sm:$0xff]
        %v1482 = vld [vmem:[#allocation7 + $0x3d8] sm:$0xff]
        %v1483 = vld [vmem:[#allocation7 + $0x3e0] sm:$0xff]
        %v1484 = vld [vmem:[#allocation7 + $0x3e8] sm:$0xff]
        %v1485 = vld [vmem:[#allocation7 + $0x3f0] sm:$0xff]
        %v1486 = vld [vmem:[#allocation7 + $0x3f8] sm:$0xff]
        %v1487 = vld [vmem:[%s4] sm:$0xf]
        %v1489 = vlaneseq
        %v1490 = vshrl.u32 %v1489, 7
        %v1491 = vsub.s32 0, %v1490
        %v1492 = vrot.slane %v1487, %v1491
        %v1493 = vlaneseq
        %v1494 = vshrl.u32 %v1493, 7
        %v1495 = vsub.s32 1, %v1494
        %v1496 = vrot.slane %v1487, %v1495
        %v1497 = vlaneseq
        %v1498 = vshrl.u32 %v1497, 7
        %v1499 = vsub.s32 2, %v1498
        %v1500 = vrot.slane %v1487, %v1499
        %v1501 = vlaneseq
        %v1502 = vshrl.u32 %v1501, 7
        %v1503 = vsub.s32 3, %v1502
        %v1504 = vrot.slane %v1487, %v1503
        %v1637 = vunpack.c.l.b16 %v1359
        %v1638 = vunpack.c.h.b16 %v1359
        %v1639 = vunpack.c.l.b16 %v1360
        %v1640 = vunpack.c.h.b16 %v1360
        %v1641 = vunpack.c.l.b16 %v1361
        %v1642 = vunpack.c.h.b16 %v1361
        %v1643 = vunpack.c.l.b16 %v1362
        %v1644 = vunpack.c.h.b16 %v1362
        %v1645 = vunpack.c.l.b16 %v1363
        %v1646 = vunpack.c.h.b16 %v1363
        %v1647 = vunpack.c.l.b16 %v1364
        %v1648 = vunpack.c.h.b16 %v1364
        %v1649 = vunpack.c.l.b16 %v1365
        %v1650 = vunpack.c.h.b16 %v1365
        %v1651 = vunpack.c.l.b16 %v1366
        %v1652 = vunpack.c.h.b16 %v1366
        %v1653 = vunpack.c.l.b16 %v1367
        %v1654 = vunpack.c.h.b16 %v1367
        %v1655 = vunpack.c.l.b16 %v1368
        %v1656 = vunpack.c.h.b16 %v1368
        %v1657 = vunpack.c.l.b16 %v1369
        %v1658 = vunpack.c.h.b16 %v1369
        %v1659 = vunpack.c.l.b16 %v1370
        %v1660 = vunpack.c.h.b16 %v1370
        %v1661 = vunpack.c.l.b16 %v1371
        %v1662 = vunpack.c.h.b16 %v1371
        %v1663 = vunpack.c.l.b16 %v1372
        %v1664 = vunpack.c.h.b16 %v1372
        %v1665 = vunpack.c.l.b16 %v1373
        %v1666 = vunpack.c.h.b16 %v1373
        %v1667 = vunpack.c.l.b16 %v1374
        %v1668 = vunpack.c.h.b16 %v1374
        %v1669 = vunpack.c.l.b16 %v1375
        %v1670 = vunpack.c.h.b16 %v1375
        %v1671 = vunpack.c.l.b16 %v1376
        %v1672 = vunpack.c.h.b16 %v1376
        %v1673 = vunpack.c.l.b16 %v1377
        %v1674 = vunpack.c.h.b16 %v1377
        %v1675 = vunpack.c.l.b16 %v1378
        %v1676 = vunpack.c.h.b16 %v1378
        %v1677 = vunpack.c.l.b16 %v1379
        %v1678 = vunpack.c.h.b16 %v1379
        %v1679 = vunpack.c.l.b16 %v1380
        %v1680 = vunpack.c.h.b16 %v1380
        %v1681 = vunpack.c.l.b16 %v1381
        %v1682 = vunpack.c.h.b16 %v1381
        %v1683 = vunpack.c.l.b16 %v1382
        %v1684 = vunpack.c.h.b16 %v1382
        %v1685 = vunpack.c.l.b16 %v1383
        %v1686 = vunpack.c.h.b16 %v1383
        %v1687 = vunpack.c.l.b16 %v1384
        %v1688 = vunpack.c.h.b16 %v1384
        %v1689 = vunpack.c.l.b16 %v1385
        %v1690 = vunpack.c.h.b16 %v1385
        %v1691 = vunpack.c.l.b16 %v1386
        %v1692 = vunpack.c.h.b16 %v1386
        %v1693 = vunpack.c.l.b16 %v1387
        %v1694 = vunpack.c.h.b16 %v1387
        %v1695 = vunpack.c.l.b16 %v1388
        %v1696 = vunpack.c.h.b16 %v1388
        %v1697 = vunpack.c.l.b16 %v1389
        %v1698 = vunpack.c.h.b16 %v1389
        %v1699 = vunpack.c.l.b16 %v1390
        %v1700 = vunpack.c.h.b16 %v1390
        %v1701 = vunpack.c.l.b16 %v1391
        %v1702 = vunpack.c.h.b16 %v1391
        %v1703 = vunpack.c.l.b16 %v1392
        %v1704 = vunpack.c.h.b16 %v1392
        %v1705 = vunpack.c.l.b16 %v1393
        %v1706 = vunpack.c.h.b16 %v1393
        %v1707 = vunpack.c.l.b16 %v1394
        %v1708 = vunpack.c.h.b16 %v1394
        %v1709 = vunpack.c.l.b16 %v1395
        %v1710 = vunpack.c.h.b16 %v1395
        %v1711 = vunpack.c.l.b16 %v1396
        %v1712 = vunpack.c.h.b16 %v1396
        %v1713 = vunpack.c.l.b16 %v1397
        %v1714 = vunpack.c.h.b16 %v1397
        %v1715 = vunpack.c.l.b16 %v1398
        %v1716 = vunpack.c.h.b16 %v1398
        %v1717 = vunpack.c.l.b16 %v1399
        %v1718 = vunpack.c.h.b16 %v1399
        %v1719 = vunpack.c.l.b16 %v1400
        %v1720 = vunpack.c.h.b16 %v1400
        %v1721 = vunpack.c.l.b16 %v1401
        %v1722 = vunpack.c.h.b16 %v1401
        %v1723 = vunpack.c.l.b16 %v1402
        %v1724 = vunpack.c.h.b16 %v1402
        %v1725 = vunpack.c.l.b16 %v1403
        %v1726 = vunpack.c.h.b16 %v1403
        %v1727 = vunpack.c.l.b16 %v1404
        %v1728 = vunpack.c.h.b16 %v1404
        %v1729 = vunpack.c.l.b16 %v1405
        %v1730 = vunpack.c.h.b16 %v1405
        %v1731 = vunpack.c.l.b16 %v1406
        %v1732 = vunpack.c.h.b16 %v1406
        %v1733 = vunpack.c.l.b16 %v1407
        %v1734 = vunpack.c.h.b16 %v1407
        %v1735 = vunpack.c.l.b16 %v1408
        %v1736 = vunpack.c.h.b16 %v1408
        %v1737 = vunpack.c.l.b16 %v1409
        %v1738 = vunpack.c.h.b16 %v1409
        %v1739 = vunpack.c.l.b16 %v1410
        %v1740 = vunpack.c.h.b16 %v1410
        %v1741 = vunpack.c.l.b16 %v1411
        %v1742 = vunpack.c.h.b16 %v1411
        %v1743 = vunpack.c.l.b16 %v1412
        %v1744 = vunpack.c.h.b16 %v1412
        %v1745 = vunpack.c.l.b16 %v1413
        %v1746 = vunpack.c.h.b16 %v1413
        %v1747 = vunpack.c.l.b16 %v1414
        %v1748 = vunpack.c.h.b16 %v1414
        %v1749 = vunpack.c.l.b16 %v1415
        %v1750 = vunpack.c.h.b16 %v1415
        %v1751 = vunpack.c.l.b16 %v1416
        %v1752 = vunpack.c.h.b16 %v1416
        %v1753 = vunpack.c.l.b16 %v1417
        %v1754 = vunpack.c.h.b16 %v1417
        %v1755 = vunpack.c.l.b16 %v1418
        %v1756 = vunpack.c.h.b16 %v1418
        %v1757 = vunpack.c.l.b16 %v1419
        %v1758 = vunpack.c.h.b16 %v1419
        %v1759 = vunpack.c.l.b16 %v1420
        %v1760 = vunpack.c.h.b16 %v1420
        %v1761 = vunpack.c.l.b16 %v1421
        %v1762 = vunpack.c.h.b16 %v1421
        %v1763 = vunpack.c.l.b16 %v1422
        %v1764 = vunpack.c.h.b16 %v1422
        %v1765 = vunpack.c.l.b16 %v1423
        %v1766 = vunpack.c.h.b16 %v1423
        %v1767 = vunpack.c.l.b16 %v1424
        %v1768 = vunpack.c.h.b16 %v1424
        %v1769 = vunpack.c.l.b16 %v1425
        %v1770 = vunpack.c.h.b16 %v1425
        %v1771 = vunpack.c.l.b16 %v1426
        %v1772 = vunpack.c.h.b16 %v1426
        %v1773 = vunpack.c.l.b16 %v1427
        %v1774 = vunpack.c.h.b16 %v1427
        %v1775 = vunpack.c.l.b16 %v1428
        %v1776 = vunpack.c.h.b16 %v1428
        %v1777 = vunpack.c.l.b16 %v1429
        %v1778 = vunpack.c.h.b16 %v1429
        %v1779 = vunpack.c.l.b16 %v1430
        %v1780 = vunpack.c.h.b16 %v1430
        %v1781 = vunpack.c.l.b16 %v1431
        %v1782 = vunpack.c.h.b16 %v1431
        %v1783 = vunpack.c.l.b16 %v1432
        %v1784 = vunpack.c.h.b16 %v1432
        %v1785 = vunpack.c.l.b16 %v1433
        %v1786 = vunpack.c.h.b16 %v1433
        %v1787 = vunpack.c.l.b16 %v1434
        %v1788 = vunpack.c.h.b16 %v1434
        %v1789 = vunpack.c.l.b16 %v1435
        %v1790 = vunpack.c.h.b16 %v1435
        %v1791 = vunpack.c.l.b16 %v1436
        %v1792 = vunpack.c.h.b16 %v1436
        %v1793 = vunpack.c.l.b16 %v1437
        %v1794 = vunpack.c.h.b16 %v1437
        %v1795 = vunpack.c.l.b16 %v1438
        %v1796 = vunpack.c.h.b16 %v1438
        %v1797 = vunpack.c.l.b16 %v1439
        %v1798 = vunpack.c.h.b16 %v1439
        %v1799 = vunpack.c.l.b16 %v1440
        %v1800 = vunpack.c.h.b16 %v1440
        %v1801 = vunpack.c.l.b16 %v1441
        %v1802 = vunpack.c.h.b16 %v1441
        %v1803 = vunpack.c.l.b16 %v1442
        %v1804 = vunpack.c.h.b16 %v1442
        %v1805 = vunpack.c.l.b16 %v1443
        %v1806 = vunpack.c.h.b16 %v1443
        %v1807 = vunpack.c.l.b16 %v1444
        %v1808 = vunpack.c.h.b16 %v1444
        %v1809 = vunpack.c.l.b16 %v1445
        %v1810 = vunpack.c.h.b16 %v1445
        %v1811 = vunpack.c.l.b16 %v1446
        %v1812 = vunpack.c.h.b16 %v1446
        %v1813 = vunpack.c.l.b16 %v1447
        %v1814 = vunpack.c.h.b16 %v1447
        %v1815 = vunpack.c.l.b16 %v1448
        %v1816 = vunpack.c.h.b16 %v1448
        %v1817 = vunpack.c.l.b16 %v1449
        %v1818 = vunpack.c.h.b16 %v1449
        %v1819 = vunpack.c.l.b16 %v1450
        %v1820 = vunpack.c.h.b16 %v1450
        %v1821 = vunpack.c.l.b16 %v1451
        %v1822 = vunpack.c.h.b16 %v1451
        %v1823 = vunpack.c.l.b16 %v1452
        %v1824 = vunpack.c.h.b16 %v1452
        %v1825 = vunpack.c.l.b16 %v1453
        %v1826 = vunpack.c.h.b16 %v1453
        %v1827 = vunpack.c.l.b16 %v1454
        %v1828 = vunpack.c.h.b16 %v1454
        %v1829 = vunpack.c.l.b16 %v1455
        %v1830 = vunpack.c.h.b16 %v1455
        %v1831 = vunpack.c.l.b16 %v1456
        %v1832 = vunpack.c.h.b16 %v1456
        %v1833 = vunpack.c.l.b16 %v1457
        %v1834 = vunpack.c.h.b16 %v1457
        %v1835 = vunpack.c.l.b16 %v1458
        %v1836 = vunpack.c.h.b16 %v1458
        %v1837 = vunpack.c.l.b16 %v1459
        %v1838 = vunpack.c.h.b16 %v1459
        %v1839 = vunpack.c.l.b16 %v1460
        %v1840 = vunpack.c.h.b16 %v1460
        %v1841 = vunpack.c.l.b16 %v1461
        %v1842 = vunpack.c.h.b16 %v1461
        %v1843 = vunpack.c.l.b16 %v1462
        %v1844 = vunpack.c.h.b16 %v1462
        %v1845 = vunpack.c.l.b16 %v1463
        %v1846 = vunpack.c.h.b16 %v1463
        %v1847 = vunpack.c.l.b16 %v1464
        %v1848 = vunpack.c.h.b16 %v1464
        %v1849 = vunpack.c.l.b16 %v1465
        %v1850 = vunpack.c.h.b16 %v1465
        %v1851 = vunpack.c.l.b16 %v1466
        %v1852 = vunpack.c.h.b16 %v1466
        %v1853 = vunpack.c.l.b16 %v1467
        %v1854 = vunpack.c.h.b16 %v1467
        %v1855 = vunpack.c.l.b16 %v1468
        %v1856 = vunpack.c.h.b16 %v1468
        %v1857 = vunpack.c.l.b16 %v1469
        %v1858 = vunpack.c.h.b16 %v1469
        %v1859 = vunpack.c.l.b16 %v1470
        %v1860 = vunpack.c.h.b16 %v1470
        %v1861 = vunpack.c.l.b16 %v1471
        %v1862 = vunpack.c.h.b16 %v1471
        %v1863 = vunpack.c.l.b16 %v1472
        %v1864 = vunpack.c.h.b16 %v1472
        %v1865 = vunpack.c.l.b16 %v1473
        %v1866 = vunpack.c.h.b16 %v1473
        %v1867 = vunpack.c.l.b16 %v1474
        %v1868 = vunpack.c.h.b16 %v1474
        %v1869 = vunpack.c.l.b16 %v1475
        %v1870 = vunpack.c.h.b16 %v1475
        %v1871 = vunpack.c.l.b16 %v1476
        %v1872 = vunpack.c.h.b16 %v1476
        %v1873 = vunpack.c.l.b16 %v1477
        %v1874 = vunpack.c.h.b16 %v1477
        %v1875 = vunpack.c.l.b16 %v1478
        %v1876 = vunpack.c.h.b16 %v1478
        %v1877 = vunpack.c.l.b16 %v1479
        %v1878 = vunpack.c.h.b16 %v1479
        %v1879 = vunpack.c.l.b16 %v1480
        %v1880 = vunpack.c.h.b16 %v1480
        %v1881 = vunpack.c.l.b16 %v1481
        %v1882 = vunpack.c.h.b16 %v1481
        %v1883 = vunpack.c.l.b16 %v1482
        %v1884 = vunpack.c.h.b16 %v1482
        %v1885 = vunpack.c.l.b16 %v1483
        %v1886 = vunpack.c.h.b16 %v1483
        %v1887 = vunpack.c.l.b16 %v1484
        %v1888 = vunpack.c.h.b16 %v1484
        %v1889 = vunpack.c.l.b16 %v1485
        %v1890 = vunpack.c.h.b16 %v1485
        %v1891 = vunpack.c.l.b16 %v1486
        %v1892 = vunpack.c.h.b16 %v1486
        %v1893 = vpack.c.b16 %v1641, %v1637
        %v1894 = vpack.c.b16 %v1642, %v1638
        %v1895 = vpack.c.b16 %v1643, %v1639
        %v1896 = vpack.c.b16 %v1644, %v1640
        %v1897 = vpack.c.b16 %v1649, %v1645
        %v1898 = vpack.c.b16 %v1650, %v1646
        %v1899 = vpack.c.b16 %v1651, %v1647
        %v1900 = vpack.c.b16 %v1652, %v1648
        %v1901 = vpack.c.b16 %v1657, %v1653
        %v1902 = vpack.c.b16 %v1658, %v1654
        %v1903 = vpack.c.b16 %v1659, %v1655
        %v1904 = vpack.c.b16 %v1660, %v1656
        %v1905 = vpack.c.b16 %v1665, %v1661
        %v1906 = vpack.c.b16 %v1666, %v1662
        %v1907 = vpack.c.b16 %v1667, %v1663
        %v1908 = vpack.c.b16 %v1668, %v1664
        %v1909 = vpack.c.b16 %v1673, %v1669
        %v1910 = vpack.c.b16 %v1674, %v1670
        %v1911 = vpack.c.b16 %v1675, %v1671
        %v1912 = vpack.c.b16 %v1676, %v1672
        %v1913 = vpack.c.b16 %v1681, %v1677
        %v1914 = vpack.c.b16 %v1682, %v1678
        %v1915 = vpack.c.b16 %v1683, %v1679
        %v1916 = vpack.c.b16 %v1684, %v1680
        %v1917 = vpack.c.b16 %v1689, %v1685
        %v1918 = vpack.c.b16 %v1690, %v1686
        %v1919 = vpack.c.b16 %v1691, %v1687
        %v1920 = vpack.c.b16 %v1692, %v1688
        %v1921 = vpack.c.b16 %v1697, %v1693
        %v1922 = vpack.c.b16 %v1698, %v1694
        %v1923 = vpack.c.b16 %v1699, %v1695
        %v1924 = vpack.c.b16 %v1700, %v1696
        %v1925 = vpack.c.b16 %v1705, %v1701
        %v1926 = vpack.c.b16 %v1706, %v1702
        %v1927 = vpack.c.b16 %v1707, %v1703
        %v1928 = vpack.c.b16 %v1708, %v1704
        %v1929 = vpack.c.b16 %v1713, %v1709
        %v1930 = vpack.c.b16 %v1714, %v1710
        %v1931 = vpack.c.b16 %v1715, %v1711
        %v1932 = vpack.c.b16 %v1716, %v1712
        %v1933 = vpack.c.b16 %v1721, %v1717
        %v1934 = vpack.c.b16 %v1722, %v1718
        %v1935 = vpack.c.b16 %v1723, %v1719
        %v1936 = vpack.c.b16 %v1724, %v1720
        %v1937 = vpack.c.b16 %v1729, %v1725
        %v1938 = vpack.c.b16 %v1730, %v1726
        %v1939 = vpack.c.b16 %v1731, %v1727
        %v1940 = vpack.c.b16 %v1732, %v1728
        %v1941 = vpack.c.b16 %v1737, %v1733
        %v1942 = vpack.c.b16 %v1738, %v1734
        %v1943 = vpack.c.b16 %v1739, %v1735
        %v1944 = vpack.c.b16 %v1740, %v1736
        %v1945 = vpack.c.b16 %v1745, %v1741
        %v1946 = vpack.c.b16 %v1746, %v1742
        %v1947 = vpack.c.b16 %v1747, %v1743
        %v1948 = vpack.c.b16 %v1748, %v1744
        %v1949 = vpack.c.b16 %v1753, %v1749
        %v1950 = vpack.c.b16 %v1754, %v1750
        %v1951 = vpack.c.b16 %v1755, %v1751
        %v1952 = vpack.c.b16 %v1756, %v1752
        %v1953 = vpack.c.b16 %v1761, %v1757
        %v1954 = vpack.c.b16 %v1762, %v1758
        %v1955 = vpack.c.b16 %v1763, %v1759
        %v1956 = vpack.c.b16 %v1764, %v1760
        %v1957 = vpack.c.b16 %v1769, %v1765
        %v1958 = vpack.c.b16 %v1770, %v1766
        %v1959 = vpack.c.b16 %v1771, %v1767
        %v1960 = vpack.c.b16 %v1772, %v1768
        %v1961 = vpack.c.b16 %v1777, %v1773
        %v1962 = vpack.c.b16 %v1778, %v1774
        %v1963 = vpack.c.b16 %v1779, %v1775
        %v1964 = vpack.c.b16 %v1780, %v1776
        %v1965 = vpack.c.b16 %v1785, %v1781
        %v1966 = vpack.c.b16 %v1786, %v1782
        %v1967 = vpack.c.b16 %v1787, %v1783
        %v1968 = vpack.c.b16 %v1788, %v1784
        %v1969 = vpack.c.b16 %v1793, %v1789
        %v1970 = vpack.c.b16 %v1794, %v1790
        %v1971 = vpack.c.b16 %v1795, %v1791
        %v1972 = vpack.c.b16 %v1796, %v1792
        %v1973 = vpack.c.b16 %v1801, %v1797
        %v1974 = vpack.c.b16 %v1802, %v1798
        %v1975 = vpack.c.b16 %v1803, %v1799
        %v1976 = vpack.c.b16 %v1804, %v1800
        %v1977 = vpack.c.b16 %v1809, %v1805
        %v1978 = vpack.c.b16 %v1810, %v1806
        %v1979 = vpack.c.b16 %v1811, %v1807
        %v1980 = vpack.c.b16 %v1812, %v1808
        %v1981 = vpack.c.b16 %v1817, %v1813
        %v1982 = vpack.c.b16 %v1818, %v1814
        %v1983 = vpack.c.b16 %v1819, %v1815
        %v1984 = vpack.c.b16 %v1820, %v1816
        %v1985 = vpack.c.b16 %v1825, %v1821
        %v1986 = vpack.c.b16 %v1826, %v1822
        %v1987 = vpack.c.b16 %v1827, %v1823
        %v1988 = vpack.c.b16 %v1828, %v1824
        %v1989 = vpack.c.b16 %v1833, %v1829
        %v1990 = vpack.c.b16 %v1834, %v1830
        %v1991 = vpack.c.b16 %v1835, %v1831
        %v1992 = vpack.c.b16 %v1836, %v1832
        %v1993 = vpack.c.b16 %v1841, %v1837
        %v1994 = vpack.c.b16 %v1842, %v1838
        %v1995 = vpack.c.b16 %v1843, %v1839
        %v1996 = vpack.c.b16 %v1844, %v1840
        %v1997 = vpack.c.b16 %v1849, %v1845
        %v1998 = vpack.c.b16 %v1850, %v1846
        %v1999 = vpack.c.b16 %v1851, %v1847
        %v2000 = vpack.c.b16 %v1852, %v1848
        %v2001 = vpack.c.b16 %v1857, %v1853
        %v2002 = vpack.c.b16 %v1858, %v1854
        %v2003 = vpack.c.b16 %v1859, %v1855
        %v2004 = vpack.c.b16 %v1860, %v1856
        %v2005 = vpack.c.b16 %v1865, %v1861
        %v2006 = vpack.c.b16 %v1866, %v1862
        %v2007 = vpack.c.b16 %v1867, %v1863
        %v2008 = vpack.c.b16 %v1868, %v1864
        %v2009 = vpack.c.b16 %v1873, %v1869
        %v2010 = vpack.c.b16 %v1874, %v1870
        %v2011 = vpack.c.b16 %v1875, %v1871
        %v2012 = vpack.c.b16 %v1876, %v1872
        %v2013 = vpack.c.b16 %v1881, %v1877
        %v2014 = vpack.c.b16 %v1882, %v1878
        %v2015 = vpack.c.b16 %v1883, %v1879
        %v2016 = vpack.c.b16 %v1884, %v1880
        %v2017 = vpack.c.b16 %v1889, %v1885
        %v2018 = vpack.c.b16 %v1890, %v1886
        %v2019 = vpack.c.b16 %v1891, %v1887
        %v2020 = vpack.c.b16 %v1892, %v1888
        %2149 = vmatprep.subr.bf16.mxu0 %v1894
        %2150 = vmatpush1.bf16.msra.mxu0 %v1893
        %2151 = vmatprep.subr.bf16.mxu0 %v1898
        %2152 = vmatpush1.bf16.msra.mxu0 %v1897
        %2153 = vmatprep.subr.bf16.mxu0 %v1902
        %2154 = vmatpush1.bf16.msra.mxu0 %v1901
        %2155 = vmatprep.subr.bf16.mxu0 %v1906
        %2156 = vmatpush1.bf16.msra.mxu0 %v1905
        %2157 = vmatprep.subr.bf16.mxu0 %v1910
        %2158 = vmatpush1.bf16.msra.mxu0 %v1909
        %2159 = vmatprep.subr.bf16.mxu0 %v1914
        %2160 = vmatpush1.bf16.msra.mxu0 %v1913
        %2161 = vmatprep.subr.bf16.mxu0 %v1918
        %2162 = vmatpush1.bf16.msra.mxu0 %v1917
        %2163 = vmatprep.subr.bf16.mxu0 %v1922
        %2164 = vmatpush1.bf16.msra.mxu0 %v1921
        %2165 = vmatprep.subr.bf16.mxu0 %v1926
        %2166 = vmatpush1.bf16.msra.mxu0 %v1925
        %2167 = vmatprep.subr.bf16.mxu0 %v1930
        %2168 = vmatpush1.bf16.msra.mxu0 %v1929
        %2169 = vmatprep.subr.bf16.mxu0 %v1934
        %2170 = vmatpush1.bf16.msra.mxu0 %v1933
        %2171 = vmatprep.subr.bf16.mxu0 %v1938
        %2172 = vmatpush1.bf16.msra.mxu0 %v1937
        %2173 = vmatprep.subr.bf16.mxu0 %v1942
        %2174 = vmatpush1.bf16.msra.mxu0 %v1941
        %2175 = vmatprep.subr.bf16.mxu0 %v1946
        %2176 = vmatpush1.bf16.msra.mxu0 %v1945
        %2177 = vmatprep.subr.bf16.mxu0 %v1950
        %2178 = vmatpush1.bf16.msra.mxu0 %v1949
        %2179 = vmatprep.subr.bf16.mxu0 %v1954
        %2180 = vmatpush1.bf16.msra.mxu0 %v1953
        %2181 = vmatprep.mubr.bf16.mxu0 %v1356
        %2182 = vmatmul.mubr.bf16.gmra.mrb[0].mxu0 %v1355
        %v2183 = vpop.f32.mrb[0].mxu0
        %v2184 = vadd.f32 %v1492, %v2183
        %v2185 = vpop.f32.mrb[0].mxu0
        %v2186 = vadd.f32 %v1496, %v2185
        %v2187 = vpop.f32.mrb[0].mxu0
        %v2188 = vadd.f32 %v1492, %v2187
        %v2189 = vpop.f32.mrb[0].mxu0
        %v2190 = vadd.f32 %v1496, %v2189
        %2191 = vdwg.mxu0
        %2192 = vmatprep.subr.bf16.mxu0 %v1958
        %2193 = vmatpush1.bf16.msra.mxu0 %v1957
        %2194 = vmatprep.subr.bf16.mxu0 %v1962
        %2195 = vmatpush1.bf16.msra.mxu0 %v1961
        %2196 = vmatprep.subr.bf16.mxu0 %v1966
        %2197 = vmatpush1.bf16.msra.mxu0 %v1965
        %2198 = vmatprep.subr.bf16.mxu0 %v1970
        %2199 = vmatpush1.bf16.msra.mxu0 %v1969
        %2200 = vmatprep.subr.bf16.mxu0 %v1974
        %2201 = vmatpush1.bf16.msra.mxu0 %v1973
        %2202 = vmatprep.subr.bf16.mxu0 %v1978
        %2203 = vmatpush1.bf16.msra.mxu0 %v1977
        %2204 = vmatprep.subr.bf16.mxu0 %v1982
        %2205 = vmatpush1.bf16.msra.mxu0 %v1981
        %2206 = vmatprep.subr.bf16.mxu0 %v1986
        %2207 = vmatpush1.bf16.msra.mxu0 %v1985
        %2208 = vmatprep.subr.bf16.mxu0 %v1990
        %2209 = vmatpush1.bf16.msra.mxu0 %v1989
        %2210 = vmatprep.subr.bf16.mxu0 %v1994
        %2211 = vmatpush1.bf16.msra.mxu0 %v1993
        %2212 = vmatprep.subr.bf16.mxu0 %v1998
        %2213 = vmatpush1.bf16.msra.mxu0 %v1997
        %2214 = vmatprep.subr.bf16.mxu0 %v2002
        %2215 = vmatpush1.bf16.msra.mxu0 %v2001
        %2216 = vmatprep.subr.bf16.mxu0 %v2006
        %2217 = vmatpush1.bf16.msra.mxu0 %v2005
        %2218 = vmatprep.subr.bf16.mxu0 %v2010
        %2219 = vmatpush1.bf16.msra.mxu0 %v2009
        %2220 = vmatprep.subr.bf16.mxu0 %v2014
        %2221 = vmatpush1.bf16.msra.mxu0 %v2013
        %2222 = vmatprep.subr.bf16.mxu0 %v2018
        %2223 = vmatpush1.bf16.msra.mxu0 %v2017
        %2224 = vmatprep.mubr.bf16.mxu0 %v1358
        %2225 = vmatmul.mubr.bf16.gmra.mrb[0].mxu0 %v1357
        %v2226 = vpop.f32.mrb[0].mxu0
        %v2227 = vadd.f32 %v2184, %v2226
        %v2228 = vpop.f32.mrb[0].mxu0
        %v2229 = vadd.f32 %v2186, %v2228
        %v2230 = vpop.f32.mrb[0].mxu0
        %v2231 = vadd.f32 %v2188, %v2230
        %v2232 = vpop.f32.mrb[0].mxu0
        %v2233 = vadd.f32 %v2190, %v2232
        %2234 = vdwg.mxu0
        %2235 = vmatprep.subr.bf16.mxu0 %v1896
        %2236 = vmatpush1.bf16.msra.mxu0 %v1895
        %2237 = vmatprep.subr.bf16.mxu0 %v1900
        %2238 = vmatpush1.bf16.msra.mxu0 %v1899
        %2239 = vmatprep.subr.bf16.mxu0 %v1904
        %2240 = vmatpush1.bf16.msra.mxu0 %v1903
        %2241 = vmatprep.subr.bf16.mxu0 %v1908
        %2242 = vmatpush1.bf16.msra.mxu0 %v1907
        %2243 = vmatprep.subr.bf16.mxu0 %v1912
        %2244 = vmatpush1.bf16.msra.mxu0 %v1911
        %2245 = vmatprep.subr.bf16.mxu0 %v1916
        %2246 = vmatpush1.bf16.msra.mxu0 %v1915
        %2247 = vmatprep.subr.bf16.mxu0 %v1920
        %2248 = vmatpush1.bf16.msra.mxu0 %v1919
        %2249 = vmatprep.subr.bf16.mxu0 %v1924
        %2250 = vmatpush1.bf16.msra.mxu0 %v1923
        %2251 = vmatprep.subr.bf16.mxu0 %v1928
        %2252 = vmatpush1.bf16.msra.mxu0 %v1927
        %2253 = vmatprep.subr.bf16.mxu0 %v1932
        %2254 = vmatpush1.bf16.msra.mxu0 %v1931
        %2255 = vmatprep.subr.bf16.mxu0 %v1936
        %2256 = vmatpush1.bf16.msra.mxu0 %v1935
        %2257 = vmatprep.subr.bf16.mxu0 %v1940
        %2258 = vmatpush1.bf16.msra.mxu0 %v1939
        %2259 = vmatprep.subr.bf16.mxu0 %v1944
        %2260 = vmatpush1.bf16.msra.mxu0 %v1943
        %2261 = vmatprep.subr.bf16.mxu0 %v1948
        %2262 = vmatpush1.bf16.msra.mxu0 %v1947
        %2263 = vmatprep.subr.bf16.mxu0 %v1952
        %2264 = vmatpush1.bf16.msra.mxu0 %v1951
        %2265 = vmatprep.subr.bf16.mxu0 %v1956
        %2266 = vmatpush1.bf16.msra.mxu0 %v1955
        %2267 = vmatprep.mubr.bf16.mxu0 %v1356
        %2268 = vmatmul.mubr.bf16.gmra.mrb[0].mxu0 %v1355
        %v2269 = vpop.f32.mrb[0].mxu0
        %v2270 = vadd.f32 %v1500, %v2269
        %v2271 = vpop.f32.mrb[0].mxu0
        %v2272 = vadd.f32 %v1504, %v2271
        %v2273 = vpop.f32.mrb[0].mxu0
        %v2274 = vadd.f32 %v1500, %v2273
        %v2275 = vpop.f32.mrb[0].mxu0
        %v2276 = vadd.f32 %v1504, %v2275
        %2277 = vdwg.mxu0
        %2278 = vmatprep.subr.bf16.mxu0 %v1960
        %2279 = vmatpush1.bf16.msra.mxu0 %v1959
        %2280 = vmatprep.subr.bf16.mxu0 %v1964
        %2281 = vmatpush1.bf16.msra.mxu0 %v1963
        %2282 = vmatprep.subr.bf16.mxu0 %v1968
        %2283 = vmatpush1.bf16.msra.mxu0 %v1967
        %2284 = vmatprep.subr.bf16.mxu0 %v1972
        %2285 = vmatpush1.bf16.msra.mxu0 %v1971
        %2286 = vmatprep.subr.bf16.mxu0 %v1976
        %2287 = vmatpush1.bf16.msra.mxu0 %v1975
        %2288 = vmatprep.subr.bf16.mxu0 %v1980
        %2289 = vmatpush1.bf16.msra.mxu0 %v1979
        %2290 = vmatprep.subr.bf16.mxu0 %v1984
        %2291 = vmatpush1.bf16.msra.mxu0 %v1983
        %2292 = vmatprep.subr.bf16.mxu0 %v1988
        %2293 = vmatpush1.bf16.msra.mxu0 %v1987
        %2294 = vmatprep.subr.bf16.mxu0 %v1992
        %2295 = vmatpush1.bf16.msra.mxu0 %v1991
        %2296 = vmatprep.subr.bf16.mxu0 %v1996
        %2297 = vmatpush1.bf16.msra.mxu0 %v1995
        %2298 = vmatprep.subr.bf16.mxu0 %v2000
        %2299 = vmatpush1.bf16.msra.mxu0 %v1999
        %2300 = vmatprep.subr.bf16.mxu0 %v2004
        %2301 = vmatpush1.bf16.msra.mxu0 %v2003
        %2302 = vmatprep.subr.bf16.mxu0 %v2008
        %2303 = vmatpush1.bf16.msra.mxu0 %v2007
        %2304 = vmatprep.subr.bf16.mxu0 %v2012
        %2305 = vmatpush1.bf16.msra.mxu0 %v2011
        %2306 = vmatprep.subr.bf16.mxu0 %v2016
        %2307 = vmatpush1.bf16.msra.mxu0 %v2015
        %2308 = vmatprep.subr.bf16.mxu0 %v2020
        %2309 = vmatpush1.bf16.msra.mxu0 %v2019
        %2310 = vmatprep.mubr.bf16.mxu0 %v1358
        %2311 = vmatmul.mubr.bf16.gmra.mrb[0].mxu0 %v1357
        %v2312 = vpop.f32.mrb[0].mxu0
        %v2313 = vadd.f32 %v2270, %v2312
        %v2314 = vpop.f32.mrb[0].mxu0
        %v2315 = vadd.f32 %v2272, %v2314
        %v2316 = vpop.f32.mrb[0].mxu0
        %v2317 = vadd.f32 %v2274, %v2316
        %v2318 = vpop.f32.mrb[0].mxu0
        %v2319 = vadd.f32 %v2276, %v2318
        %2320 = vdwg.mxu0
        %v2321 = vmax.f32 %v2227, 0.0
        %v2322 = vmax.f32 %v2229, 0.0
        %v2323 = vmax.f32 %v2313, 0.0
        %v2324 = vmax.f32 %v2315, 0.0
        %v2325 = vmax.f32 %v2231, 0.0
        %v2326 = vmax.f32 %v2233, 0.0
        %v2327 = vmax.f32 %v2317, 0.0
        %v2328 = vmax.f32 %v2319, 0.0
        %v2329 = vpack.c.bf16 %v2325, %v2321
        %v2330 = vpack.c.bf16 %v2326, %v2322
        %v2331 = vpack.c.bf16 %v2327, %v2323
        %v2332 = vpack.c.bf16 %v2328, %v2324
        %v2333 = vld [vmem:[#allocation8] sm:$0xf]
        %v2334 = vld [vmem:[#allocation8 + $0x4] sm:$0xf]
        %v2335 = vld [vmem:[#allocation8 + $0x8] sm:$0xf]
        %v2336 = vld [vmem:[#allocation8 + $0xc] sm:$0xf]
        %v2337 = vld [vmem:[#allocation8 + $0x10] sm:$0xf]
        %v2338 = vld [vmem:[#allocation8 + $0x14] sm:$0xf]
        %v2339 = vld [vmem:[#allocation8 + $0x18] sm:$0xf]
        %v2340 = vld [vmem:[#allocation8 + $0x1c] sm:$0xf]
        %v2341 = vld [vmem:[#allocation8 + $0x20] sm:$0xf]
        %v2342 = vld [vmem:[#allocation8 + $0x24] sm:$0xf]
        %v2343 = vld [vmem:[#allocation8 + $0x28] sm:$0xf]
        %v2344 = vld [vmem:[#allocation8 + $0x2c] sm:$0xf]
        %v2345 = vld [vmem:[#allocation8 + $0x30] sm:$0xf]
        %v2346 = vld [vmem:[#allocation8 + $0x34] sm:$0xf]
        %v2347 = vld [vmem:[#allocation8 + $0x38] sm:$0xf]
        %v2348 = vld [vmem:[#allocation8 + $0x3c] sm:$0xf]
        %v2349 = vld [vmem:[#allocation8 + $0x40] sm:$0xf]
        %v2350 = vld [vmem:[#allocation8 + $0x44] sm:$0xf]
        %v2351 = vld [vmem:[#allocation8 + $0x48] sm:$0xf]
        %v2352 = vld [vmem:[#allocation8 + $0x4c] sm:$0xf]
        %v2353 = vld [vmem:[#allocation8 + $0x50] sm:$0xf]
        %v2354 = vld [vmem:[#allocation8 + $0x54] sm:$0xf]
        %v2355 = vld [vmem:[#allocation8 + $0x58] sm:$0xf]
        %v2356 = vld [vmem:[#allocation8 + $0x5c] sm:$0xf]
        %v2357 = vld [vmem:[#allocation8 + $0x60] sm:$0xf]
        %v2358 = vld [vmem:[#allocation8 + $0x64] sm:$0xf]
        %v2359 = vld [vmem:[#allocation8 + $0x68] sm:$0xf]
        %v2360 = vld [vmem:[#allocation8 + $0x6c] sm:$0xf]
        %v2361 = vld [vmem:[#allocation8 + $0x70] sm:$0xf]
        %v2362 = vld [vmem:[#allocation8 + $0x74] sm:$0xf]
        %v2363 = vld [vmem:[#allocation8 + $0x78] sm:$0xf]
        %v2364 = vld [vmem:[#allocation8 + $0x7c] sm:$0xf]
        %v2365 = vld [vmem:[#allocation8 + $0x80] sm:$0xf]
        %v2366 = vld [vmem:[#allocation8 + $0x84] sm:$0xf]
        %v2367 = vld [vmem:[#allocation8 + $0x88] sm:$0xf]
        %v2368 = vld [vmem:[#allocation8 + $0x8c] sm:$0xf]
        %v2369 = vld [vmem:[#allocation8 + $0x90] sm:$0xf]
        %v2370 = vld [vmem:[#allocation8 + $0x94] sm:$0xf]
        %v2371 = vld [vmem:[#allocation8 + $0x98] sm:$0xf]
        %v2372 = vld [vmem:[#allocation8 + $0x9c] sm:$0xf]
        %v2373 = vld [vmem:[#allocation8 + $0xa0] sm:$0xf]
        %v2374 = vld [vmem:[#allocation8 + $0xa4] sm:$0xf]
        %v2375 = vld [vmem:[#allocation8 + $0xa8] sm:$0xf]
        %v2376 = vld [vmem:[#allocation8 + $0xac] sm:$0xf]
        %v2377 = vld [vmem:[#allocation8 + $0xb0] sm:$0xf]
        %v2378 = vld [vmem:[#allocation8 + $0xb4] sm:$0xf]
        %v2379 = vld [vmem:[#allocation8 + $0xb8] sm:$0xf]
        %v2380 = vld [vmem:[#allocation8 + $0xbc] sm:$0xf]
        %v2381 = vld [vmem:[#allocation8 + $0xc0] sm:$0xf]
        %v2382 = vld [vmem:[#allocation8 + $0xc4] sm:$0xf]
        %v2383 = vld [vmem:[#allocation8 + $0xc8] sm:$0xf]
        %v2384 = vld [vmem:[#allocation8 + $0xcc] sm:$0xf]
        %v2385 = vld [vmem:[#allocation8 + $0xd0] sm:$0xf]
        %v2386 = vld [vmem:[#allocation8 + $0xd4] sm:$0xf]
        %v2387 = vld [vmem:[#allocation8 + $0xd8] sm:$0xf]
        %v2388 = vld [vmem:[#allocation8 + $0xdc] sm:$0xf]
        %v2389 = vld [vmem:[#allocation8 + $0xe0] sm:$0xf]
        %v2390 = vld [vmem:[#allocation8 + $0xe4] sm:$0xf]
        %v2391 = vld [vmem:[#allocation8 + $0xe8] sm:$0xf]
        %v2392 = vld [vmem:[#allocation8 + $0xec] sm:$0xf]
        %v2393 = vld [vmem:[#allocation8 + $0xf0] sm:$0xf]
        %v2394 = vld [vmem:[#allocation8 + $0xf4] sm:$0xf]
        %v2395 = vld [vmem:[#allocation8 + $0xf8] sm:$0xf]
        %v2396 = vld [vmem:[#allocation8 + $0xfc] sm:$0xf]
        %v2397 = vld [vmem:[%s6] sm:$0x1]
        %v2399 = vlaneseq
        %v2400 = vshrl.u32 %v2399, 7
        %v2401 = vsub.s32 0, %v2400
        %v2402 = vrot.slane %v2397, %v2401
        %v2468 = vunpack.c.l.b16 %v2333
        %v2469 = vunpack.c.l.b16 %v2334
        %v2470 = vunpack.c.l.b16 %v2335
        %v2471 = vunpack.c.l.b16 %v2336
        %v2472 = vunpack.c.l.b16 %v2337
        %v2473 = vunpack.c.l.b16 %v2338
        %v2474 = vunpack.c.l.b16 %v2339
        %v2475 = vunpack.c.l.b16 %v2340
        %v2476 = vunpack.c.l.b16 %v2341
        %v2477 = vunpack.c.l.b16 %v2342
        %v2478 = vunpack.c.l.b16 %v2343
        %v2479 = vunpack.c.l.b16 %v2344
        %v2480 = vunpack.c.l.b16 %v2345
        %v2481 = vunpack.c.l.b16 %v2346
        %v2482 = vunpack.c.l.b16 %v2347
        %v2483 = vunpack.c.l.b16 %v2348
        %v2484 = vunpack.c.l.b16 %v2349
        %v2485 = vunpack.c.l.b16 %v2350
        %v2486 = vunpack.c.l.b16 %v2351
        %v2487 = vunpack.c.l.b16 %v2352
        %v2488 = vunpack.c.l.b16 %v2353
        %v2489 = vunpack.c.l.b16 %v2354
        %v2490 = vunpack.c.l.b16 %v2355
        %v2491 = vunpack.c.l.b16 %v2356
        %v2492 = vunpack.c.l.b16 %v2357
        %v2493 = vunpack.c.l.b16 %v2358
        %v2494 = vunpack.c.l.b16 %v2359
        %v2495 = vunpack.c.l.b16 %v2360
        %v2496 = vunpack.c.l.b16 %v2361
        %v2497 = vunpack.c.l.b16 %v2362
        %v2498 = vunpack.c.l.b16 %v2363
        %v2499 = vunpack.c.l.b16 %v2364
        %v2500 = vunpack.c.l.b16 %v2365
        %v2501 = vunpack.c.l.b16 %v2366
        %v2502 = vunpack.c.l.b16 %v2367
        %v2503 = vunpack.c.l.b16 %v2368
        %v2504 = vunpack.c.l.b16 %v2369
        %v2505 = vunpack.c.l.b16 %v2370
        %v2506 = vunpack.c.l.b16 %v2371
        %v2507 = vunpack.c.l.b16 %v2372
        %v2508 = vunpack.c.l.b16 %v2373
        %v2509 = vunpack.c.l.b16 %v2374
        %v2510 = vunpack.c.l.b16 %v2375
        %v2511 = vunpack.c.l.b16 %v2376
        %v2512 = vunpack.c.l.b16 %v2377
        %v2513 = vunpack.c.l.b16 %v2378
        %v2514 = vunpack.c.l.b16 %v2379
        %v2515 = vunpack.c.l.b16 %v2380
        %v2516 = vunpack.c.l.b16 %v2381
        %v2517 = vunpack.c.l.b16 %v2382
        %v2518 = vunpack.c.l.b16 %v2383
        %v2519 = vunpack.c.l.b16 %v2384
        %v2520 = vunpack.c.l.b16 %v2385
        %v2521 = vunpack.c.l.b16 %v2386
        %v2522 = vunpack.c.l.b16 %v2387
        %v2523 = vunpack.c.l.b16 %v2388
        %v2524 = vunpack.c.l.b16 %v2389
        %v2525 = vunpack.c.l.b16 %v2390
        %v2526 = vunpack.c.l.b16 %v2391
        %v2527 = vunpack.c.l.b16 %v2392
        %v2528 = vunpack.c.l.b16 %v2393
        %v2529 = vunpack.c.l.b16 %v2394
        %v2530 = vunpack.c.l.b16 %v2395
        %v2531 = vunpack.c.l.b16 %v2396
        %v2532 = vpack.c.b16 %v2469, %v2468
        %v2533 = vpack.c.b16 %v2471, %v2470
        %v2534 = vpack.c.b16 %v2473, %v2472
        %v2535 = vpack.c.b16 %v2475, %v2474
        %v2536 = vpack.c.b16 %v2477, %v2476
        %v2537 = vpack.c.b16 %v2479, %v2478
        %v2538 = vpack.c.b16 %v2481, %v2480
        %v2539 = vpack.c.b16 %v2483, %v2482
        %v2540 = vpack.c.b16 %v2485, %v2484
        %v2541 = vpack.c.b16 %v2487, %v2486
        %v2542 = vpack.c.b16 %v2489, %v2488
        %v2543 = vpack.c.b16 %v2491, %v2490
        %v2544 = vpack.c.b16 %v2493, %v2492
        %v2545 = vpack.c.b16 %v2495, %v2494
        %v2546 = vpack.c.b16 %v2497, %v2496
        %v2547 = vpack.c.b16 %v2499, %v2498
        %v2548 = vpack.c.b16 %v2501, %v2500
        %v2549 = vpack.c.b16 %v2503, %v2502
        %v2550 = vpack.c.b16 %v2505, %v2504
        %v2551 = vpack.c.b16 %v2507, %v2506
        %v2552 = vpack.c.b16 %v2509, %v2508
        %v2553 = vpack.c.b16 %v2511, %v2510
        %v2554 = vpack.c.b16 %v2513, %v2512
        %v2555 = vpack.c.b16 %v2515, %v2514
        %v2556 = vpack.c.b16 %v2517, %v2516
        %v2557 = vpack.c.b16 %v2519, %v2518
        %v2558 = vpack.c.b16 %v2521, %v2520
        %v2559 = vpack.c.b16 %v2523, %v2522
        %v2560 = vpack.c.b16 %v2525, %v2524
        %v2561 = vpack.c.b16 %v2527, %v2526
        %v2562 = vpack.c.b16 %v2529, %v2528
        %v2563 = vpack.c.b16 %v2531, %v2530
        %2596 = vmatprep.subr.bf16.mxu0 0
        %2597 = vmatpush1.bf16.msra.mxu0 %v2532
        %2598 = vmatprep.subr.bf16.mxu0 0
        %2599 = vmatpush1.bf16.msra.mxu0 %v2533
        %2600 = vmatprep.subr.bf16.mxu0 0
        %2601 = vmatpush1.bf16.msra.mxu0 %v2534
        %2602 = vmatprep.subr.bf16.mxu0 0
        %2603 = vmatpush1.bf16.msra.mxu0 %v2535
        %2604 = vmatprep.subr.bf16.mxu0 0
        %2605 = vmatpush1.bf16.msra.mxu0 %v2536
        %2606 = vmatprep.subr.bf16.mxu0 0
        %2607 = vmatpush1.bf16.msra.mxu0 %v2537
        %2608 = vmatprep.subr.bf16.mxu0 0
        %2609 = vmatpush1.bf16.msra.mxu0 %v2538
        %2610 = vmatprep.subr.bf16.mxu0 0
        %2611 = vmatpush1.bf16.msra.mxu0 %v2539
        %2612 = vmatprep.subr.bf16.mxu0 0
        %2613 = vmatpush1.bf16.msra.mxu0 %v2540
        %2614 = vmatprep.subr.bf16.mxu0 0
        %2615 = vmatpush1.bf16.msra.mxu0 %v2541
        %2616 = vmatprep.subr.bf16.mxu0 0
        %2617 = vmatpush1.bf16.msra.mxu0 %v2542
        %2618 = vmatprep.subr.bf16.mxu0 0
        %2619 = vmatpush1.bf16.msra.mxu0 %v2543
        %2620 = vmatprep.subr.bf16.mxu0 0
        %2621 = vmatpush1.bf16.msra.mxu0 %v2544
        %2622 = vmatprep.subr.bf16.mxu0 0
        %2623 = vmatpush1.bf16.msra.mxu0 %v2545
        %2624 = vmatprep.subr.bf16.mxu0 0
        %2625 = vmatpush1.bf16.msra.mxu0 %v2546
        %2626 = vmatprep.subr.bf16.mxu0 0
        %2627 = vmatpush1.bf16.msra.mxu0 %v2547
        %2628 = vmatprep.mubr.bf16.mxu0 %v2330
        %2629 = vmatmul.mubr.bf16.gmra.mrb[0].mxu0 %v2329
        %v2630 = vpop.f32.mrb[0].mxu0
        %v2631 = vadd.f32 %v2402, %v2630
        %v2632 = vpop.f32.mrb[0].mxu0
        %v2633 = vpop.f32.mrb[0].mxu0
        %v2634 = vadd.f32 %v2402, %v2633
        %v2635 = vpop.f32.mrb[0].mxu0
        %2636 = vdwg.mxu0
        %2637 = vmatprep.subr.bf16.mxu0 0
        %2638 = vmatpush1.bf16.msra.mxu0 %v2548
        %2639 = vmatprep.subr.bf16.mxu0 0
        %2640 = vmatpush1.bf16.msra.mxu0 %v2549
        %2641 = vmatprep.subr.bf16.mxu0 0
        %2642 = vmatpush1.bf16.msra.mxu0 %v2550
        %2643 = vmatprep.subr.bf16.mxu0 0
        %2644 = vmatpush1.bf16.msra.mxu0 %v2551
        %2645 = vmatprep.subr.bf16.mxu0 0
        %2646 = vmatpush1.bf16.msra.mxu0 %v2552
        %2647 = vmatprep.subr.bf16.mxu0 0
        %2648 = vmatpush1.bf16.msra.mxu0 %v2553
        %2649 = vmatprep.subr.bf16.mxu0 0
        %2650 = vmatpush1.bf16.msra.mxu0 %v2554
        %2651 = vmatprep.subr.bf16.mxu0 0
        %2652 = vmatpush1.bf16.msra.mxu0 %v2555
        %2653 = vmatprep.subr.bf16.mxu0 0
        %2654 = vmatpush1.bf16.msra.mxu0 %v2556
        %2655 = vmatprep.subr.bf16.mxu0 0
        %2656 = vmatpush1.bf16.msra.mxu0 %v2557
        %2657 = vmatprep.subr.bf16.mxu0 0
        %2658 = vmatpush1.bf16.msra.mxu0 %v2558
        %2659 = vmatprep.subr.bf16.mxu0 0
        %2660 = vmatpush1.bf16.msra.mxu0 %v2559
        %2661 = vmatprep.subr.bf16.mxu0 0
        %2662 = vmatpush1.bf16.msra.mxu0 %v2560
        %2663 = vmatprep.subr.bf16.mxu0 0
        %2664 = vmatpush1.bf16.msra.mxu0 %v2561
        %2665 = vmatprep.subr.bf16.mxu0 0
        %2666 = vmatpush1.bf16.msra.mxu0 %v2562
        %2667 = vmatprep.subr.bf16.mxu0 0
        %2668 = vmatpush1.bf16.msra.mxu0 %v2563
        %2669 = vmatprep.mubr.bf16.mxu0 %v2332
        %2670 = vmatmul.mubr.bf16.gmra.mrb[0].mxu0 %v2331
        %v2671 = vpop.f32.mrb[0].mxu0
        %v2672 = vadd.f32 %v2631, %v2671
        %v2673 = vpop.f32.mrb[0].mxu0
        %v2674 = vpop.f32.mrb[0].mxu0
        %v2675 = vadd.f32 %v2634, %v2674
        %v2676 = vpop.f32.mrb[0].mxu0
        %2677 = vdwg.mxu0
        %2678 = vst [vmem:[%s348] sm:$0xff] %v2672
        %2679 = vst [vmem:[%s348 + $0x8] sm:$0xff] %v2675
        %s2680 = sand.u32 %s186, 1
        %s2681 = scalar_lea.sflag [#allocation4], %s2680
        %s2682 = sand.u32 %s186, 1
        %s2683 = smul.addr %s2682, 16
        %s2684 = scalar_lea.vmem [#allocation10], %s2683
        // Predicated region
        $region65: #{tpu_custom_call.1} parent=47 // pred_check
          %p2685 = pneg %p196
        $region66: #{tpu_custom_call.1} parent=47 // pred_check_branch
          %2687 = sbr.rel (%p2685) target = $region68
        $region67: #{tpu_custom_call.1} parent=47 // pred_region
          %s2688 = smul.u32 2, %s26
          %s2689 = ssub.s32 3, %s2688
          %p2690 = scmp.lt.s32.totalorder %s2689, 2
          %s2691 = scalar_select %p2690, %s2689, 2
          %s2692 = smul.u32 128, %s2691
          %s2694 = ssub.s32 256, %s2692
          %2695 = vsyncadd %s2681, %s2694
          %p2696 = scmp.ne.s32.totalorder 0, %s2692
          %s2697 = smul.addr %s2688, 128
          %s2698 = scalar_lea.hbm %s7, %s2697
          %s2699 = smul.u32 8, %s2691
          %s2700 = sshll.u32 %s2684, 4
          %s2701 = int_to_ptr.vmem [resolvable:$true] %s2700
          %s2702 = sshll.u32 %s2699, 4
          %2706 = dma.vmem_to_hbm [thread:$0]  (%p2696), %s2701, %s2702, %s2698, %s2681, 128, 128, 8
        $region68: #{tpu_custom_call.1} parent=47 // pred_fallthru
          _
      $region48: #{tpu_custom_call.1} parent=5 // pred_fallthru
        _
      %p2707 = scmp.le.s32.totalorder 2, %s21
      // Predicated region
      $region69: #{tpu_custom_call.1} parent=5 // pred_check
        %p2708 = pneg %p2707
      $region70: #{tpu_custom_call.1} parent=5 // pred_check_branch
        %2710 = sbr.rel (%p2708) target = $region72
      $region71: #{tpu_custom_call.1} parent=5 // pred_region
        %s2711 = ssub.s32 %s21, 2
        // Predicated region
        $region73: #{tpu_custom_call.1} parent=71 // pred_check
          %p2712 = pneg %p202
        $region74: #{tpu_custom_call.1} parent=71 // pred_check_branch
          %2714 = sbr.rel (%p2712) target = $region76
        $region75: #{tpu_custom_call.1} parent=71 // pred_region
          %s2715 = sand.u32 %s187, 1
          %s2716 = scalar_lea.sflag [#allocation4], %s2715
          %s2717 = sand.u32 %s187, 1
          %s2718 = smul.addr %s2717, 16
          %s2719 = scalar_lea.vmem [#allocation10], %s2718
          %2720 = dma.done %s2716, 256
        $region76: #{tpu_custom_call.1} parent=71 // pred_fallthru
          _
      $region72: #{tpu_custom_call.1} parent=5 // pred_fallthru
        _
    $region6: #{tpu_custom_call.1} parent=1 // loop_footer
      %s25 = sadd.s32 1, %s21
    $region7: #{tpu_custom_call.1} parent=1 // loop_footer_branch
      %20 = sbr.rel target = $region3
    $region8: #{tpu_custom_call.1} parent=1 // loop_exit
      _
    %2721 = vsyncpa [#allocation3], 1
    %s2722 = scalar_lea.sflag [#allocation3], 1
    %2723 = vsyncpa %s2722, 1
    %2724 = vsyncpa [#allocation6], 1
    %2725 = vsyncpa [#allocation9], 1
    %2726 = vsyncpa [#allocation4], 1
    %s2727 = scalar_lea.sflag [#allocation4], 1
    %2728 = vsyncpa %s2727, 1

</llo_original>
